<compile_context>
chip_gen: v5e
topology: v5e:2x2
jax: 0.10.0
libtpu: 0.0.40
codegen_flags: <defaults>
</compile_context>

<pallas_src>
import functools

import jax
import jax.numpy as jnp
from jax.experimental import pallas as pl
from jax.experimental.pallas import tpu as pltpu

_INV_SQRT2 = 0.7071067811865476


def _nonlinear_kernel(xT_ref, w1_ref, b1_ref, w2_ref, b2_ref, oT_ref, *,
                      approximate_gelu):
    # layer1 (transposed): h^T = W1 @ x^T + b1        -> [hidden, tile_m]
    h = jnp.dot(w1_ref[...], xT_ref[...], preferred_element_type=jnp.float32)
    h = h + b1_ref[...]                      # (hidden, 1) broadcasts over lanes

    if approximate_gelu:
        # tanh form runs on the EUP (its own VLIW slot); slight numeric delta
        g = jax.nn.gelu(h, approximate=True)
    else:
        # exact erf form == PyTorch F.gelu default
        g = 0.5 * h * (1.0 + jax.lax.erf(h * _INV_SQRT2))

    # layer2 (transposed): y^T = W2 @ g^T + b2        -> [out, tile_m]
    o = jnp.dot(w2_ref[...], g.astype(w2_ref.dtype),
                preferred_element_type=jnp.float32)
    o = o + b2_ref[...]
    oT_ref[...] = o.astype(oT_ref.dtype)


def _choose_tile_m(m, requested):
    """Lane-axis row tile: multiple of 128, large enough to amortize per-step
    pipeline overhead, but never so large the grid drops below 2 steps."""
    t = max(128, min(int(requested), 2048))
    t = (t // 128) * 128
    t = min(t, pl.cdiv(m, 128) * 128)                   # don't over-pad tiny M
    if m > 128:
        t = min(t, pl.cdiv((m + 1) // 2, 128) * 128)    # keep >= 2 grid steps
    return t


def nonlinear_forward(x, w1, b1, w2, b2, *, tile_m=1024, approximate_gelu=False):
    """y = GELU(x @ W1^T + b1) @ W2^T + b2   (PyTorch nn.Linear weight layout).

    x : [..., in_f]
    w1: [hidden, in_f],  b1: [hidden]
    w2: [out_f, hidden], b2: [out_f]
    returns: [..., out_f]
    """
    *lead, in_f = x.shape
    hidden, in_f_w = w1.shape
    out_f, hidden_w = w2.shape
    assert in_f_w == in_f and hidden_w == hidden
    assert b1.shape == (hidden,) and b2.shape == (out_f,)

    x2d = x.reshape(-1, in_f)
    m = x2d.shape[0]
    tm = _choose_tile_m(m, tile_m)
    m_pad = pl.cdiv(m, tm) * tm

    # Rows -> lane axis (lane-dense compute & stores); pad rows up to the tile.
    xT = x2d.T
    if m_pad != m:
        xT = jnp.pad(xT, ((0, 0), (0, m_pad - m)))
    b1_c = b1.reshape(hidden, 1)
    b2_c = b2.reshape(out_f, 1)

    itemsize = jnp.dtype(x.dtype).itemsize
    cost = pl.CostEstimate(
        flops=2 * m * (in_f * hidden + hidden * out_f),
        transcendentals=m * hidden,
        bytes_accessed=itemsize * (m * in_f + m * out_f)
        + 4 * (hidden * in_f + hidden + out_f * hidden + out_f),
    )

    def run(single_buffer_weights):
        # Resident operands (constant index_map) -> single-buffer to halve
        # their VMEM footprint when the backend supports pl.Buffered(1).
        res = ({"pipeline_mode": pl.Buffered(1)}
               if single_buffer_weights else {})
        grid_spec = pltpu.PrefetchScalarGridSpec(
            num_scalar_prefetch=0,
            grid=(m_pad // tm,),
            in_specs=[
                pl.BlockSpec((in_f, tm), lambda i: (0, i)),              # x^T tile
                pl.BlockSpec((hidden, in_f), lambda i: (0, 0), **res),   # W1
                pl.BlockSpec((hidden, 1), lambda i: (0, 0), **res),      # b1
                pl.BlockSpec((out_f, hidden), lambda i: (0, 0), **res),  # W2
                pl.BlockSpec((out_f, 1), lambda i: (0, 0), **res),       # b2
            ],
            out_specs=pl.BlockSpec((out_f, tm), lambda i: (0, i)),       # y^T tile
        )
        return pl.pallas_call(
            functools.partial(_nonlinear_kernel,
                              approximate_gelu=approximate_gelu),
            out_shape=jax.ShapeDtypeStruct((out_f, m_pad), x.dtype),
            grid_spec=grid_spec,
            compiler_params=pltpu.CompilerParams(
                dimension_semantics=("parallel",),
                vmem_limit_bytes=32 * 1024 * 1024,
            ),
            cost_estimate=cost,
        )(xT, w1, b1_c, w2, b2_c)

    try:
        outT = run(True)
    except Exception:
        # pl.Buffered(1) not supported on this jax/backend -> default buffering
        outT = run(False)

    out2d = outT[:, :m].T
    return out2d.reshape(*lead, out_f)


def _reference(x, w1, b1, w2, b2):
    h = x @ w1.T + b1
    g = 0.5 * h * (1.0 + jax.lax.erf(h * _INV_SQRT2))
    return g @ w2.T + b2


if __name__ == "__main__":
    # NonLinear(input=32, output_size=16, hidden=None) -> hidden = 32
    IN_F, HIDDEN, OUT_F = 32, 32, 16
    BATCH, SEQ = 4, 128          # 512 flattened rows -> 2 parallel grid steps

    key = jax.random.PRNGKey(0)
    kx, kw1, kb1, kw2, kb2 = jax.random.split(key, 5)

    x = jax.random.normal(kx, (BATCH, SEQ, IN_F), dtype=jnp.float32)
    # PyTorch nn.Linear weight layout: [out_features, in_features]
    w1 = jax.random.normal(kw1, (HIDDEN, IN_F), dtype=jnp.float32) * (1.0 / IN_F ** 0.5)
    b1 = jax.random.normal(kb1, (HIDDEN,), dtype=jnp.float32) * 0.01
    w2 = jax.random.normal(kw2, (OUT_F, HIDDEN), dtype=jnp.float32) * (1.0 / HIDDEN ** 0.5)
    b2 = jax.random.normal(kb2, (OUT_F,), dtype=jnp.float32) * 0.01

    out = nonlinear_forward(x, w1, b1, w2, b2)
    out = jax.block_until_ready(out)

    ref = _reference(x, w1, b1, w2, b2)
    assert out.shape == (BATCH, SEQ, OUT_F)
    assert jnp.allclose(out, ref, atol=2e-5, rtol=2e-5), "mismatch vs reference"
    print("KERNEL_OK")
</pallas_src>

<mosaic_0001>
module attributes {stable_mosaic.version = 11 : i64} {
  func.func @_nonlinear_kernel(%arg0: i32, %arg1: memref<32x256xf32, #tpu.memory_space<vmem>>, %arg2: memref<32x32xf32, #tpu.memory_space<vmem>>, %arg3: memref<32x1xf32, #tpu.memory_space<vmem>>, %arg4: memref<16x32xf32, #tpu.memory_space<vmem>>, %arg5: memref<16x1xf32, #tpu.memory_space<vmem>>, %arg6: memref<16x256xf32, #tpu.memory_space<vmem>>) attributes {dimension_semantics = [#tpu.dimension_semantics<parallel>], iteration_bounds = array<i64: 2>, scalar_prefetch = 0 : i64, scratch_operands = 0 : i64, tpu.core_type = #tpu.core_type<tc>, window_params = [{transform_indices = @transform_0, window_bounds = array<i64: 32, 256>}, {pipeline_mode = #tpu.pipeline_mode<synchronous>, transform_indices = @transform_1, window_bounds = array<i64: 32, 32>}, {pipeline_mode = #tpu.pipeline_mode<synchronous>, transform_indices = @transform_2, window_bounds = array<i64: 32, 1>}, {pipeline_mode = #tpu.pipeline_mode<synchronous>, transform_indices = @transform_3, window_bounds = array<i64: 16, 32>}, {pipeline_mode = #tpu.pipeline_mode<synchronous>, transform_indices = @transform_4, window_bounds = array<i64: 16, 1>}, {transform_indices = @transform_5, window_bounds = array<i64: 16, 256>}]} {
    %c0 = arith.constant 0 : index
    %c0_0 = arith.constant 0 : index
    %0 = vector.load %arg2[%c0, %c0_0] : memref<32x32xf32, #tpu.memory_space<vmem>>, vector<32x32xf32>
    %c0_1 = arith.constant 0 : index
    %c0_2 = arith.constant 0 : index
    %1 = vector.load %arg1[%c0_1, %c0_2] : memref<32x256xf32, #tpu.memory_space<vmem>>, vector<32x256xf32>
    %cst = arith.constant dense<0.000000e+00> : vector<32x256xf32>
    %2 = tpu.matmul %0, %1, %cst {dimension_numbers = #tpu.dot_dimension_numbers<[1], [0], [0], [1], [0, 0, 1, 1], [], []>} : vector<32x32xf32>, vector<32x256xf32>, vector<32x256xf32> -> vector<32x256xf32>
    %c0_3 = arith.constant 0 : index
    %c0_4 = arith.constant 0 : index
    %3 = vector.load %arg3[%c0_3, %c0_4] : memref<32x1xf32, #tpu.memory_space<vmem>>, vector<32x1xf32>
    %4 = vector.broadcast %3 : vector<32x1xf32> to vector<32x256xf32>
    %5 = arith.addf %2, %4 : vector<32x256xf32>
    %cst_5 = arith.constant 5.000000e-01 : f32
    %6 = vector.broadcast %cst_5 : f32 to vector<32x256xf32>
    %7 = arith.mulf %6, %5 : vector<32x256xf32>
    %cst_6 = arith.constant 0.707106769 : f32
    %8 = vector.broadcast %cst_6 : f32 to vector<32x256xf32>
    %9 = arith.mulf %5, %8 : vector<32x256xf32>
    %10 = math.erf %9 : vector<32x256xf32>
    %cst_7 = arith.constant 1.000000e+00 : f32
    %11 = vector.broadcast %cst_7 : f32 to vector<32x256xf32>
    %12 = arith.addf %11, %10 : vector<32x256xf32>
    %13 = arith.mulf %7, %12 : vector<32x256xf32>
    %c0_8 = arith.constant 0 : index
    %c0_9 = arith.constant 0 : index
    %14 = vector.load %arg4[%c0_8, %c0_9] : memref<16x32xf32, #tpu.memory_space<vmem>>, vector<16x32xf32>
    %cst_10 = arith.constant dense<0.000000e+00> : vector<16x256xf32>
    %15 = tpu.matmul %14, %13, %cst_10 {dimension_numbers = #tpu.dot_dimension_numbers<[1], [0], [0], [1], [0, 0, 1, 1], [], []>} : vector<16x32xf32>, vector<32x256xf32>, vector<16x256xf32> -> vector<16x256xf32>
    %c0_11 = arith.constant 0 : index
    %c0_12 = arith.constant 0 : index
    %16 = vector.load %arg5[%c0_11, %c0_12] : memref<16x1xf32, #tpu.memory_space<vmem>>, vector<16x1xf32>
    %17 = vector.broadcast %16 : vector<16x1xf32> to vector<16x256xf32>
    %18 = arith.addf %15, %17 : vector<16x256xf32>
    %c0_13 = arith.constant 0 : index
    %c0_14 = arith.constant 0 : index
    %19 = vector.load %arg6[%c0_13, %c0_14] : memref<16x256xf32, #tpu.memory_space<vmem>>, vector<16x256xf32>
    tpu.vector_store %arg6[%c0_13, %c0_14], %18 {strides = array<i32>} : memref<16x256xf32, #tpu.memory_space<vmem>>, vector<16x256xf32>,
    return
  }
  func.func @transform_0(%arg0: i32) -> (i32, i32) {
    %c0_i32 = arith.constant 0 : i32
    %c0_i32_0 = arith.constant 0 : i32
    return %c0_i32, %arg0 : i32, i32
  }
  func.func @transform_1(%arg0: i32) -> (i32, i32) {
    %c0_i32 = arith.constant 0 : i32
    %c0_i32_0 = arith.constant 0 : i32
    %c0_i32_1 = arith.constant 0 : i32
    return %c0_i32, %c0_i32_0 : i32, i32
  }
  func.func @transform_2(%arg0: i32) -> (i32, i32) {
    %c0_i32 = arith.constant 0 : i32
    %c0_i32_0 = arith.constant 0 : i32
    %c0_i32_1 = arith.constant 0 : i32
    return %c0_i32, %c0_i32_0 : i32, i32
  }
  func.func @transform_3(%arg0: i32) -> (i32, i32) {
    %c0_i32 = arith.constant 0 : i32
    %c0_i32_0 = arith.constant 0 : i32
    %c0_i32_1 = arith.constant 0 : i32
    return %c0_i32, %c0_i32_0 : i32, i32
  }
  func.func @transform_4(%arg0: i32) -> (i32, i32) {
    %c0_i32 = arith.constant 0 : i32
    %c0_i32_0 = arith.constant 0 : i32
    %c0_i32_1 = arith.constant 0 : i32
    return %c0_i32, %c0_i32_0 : i32, i32
  }
  func.func @transform_5(%arg0: i32) -> (i32, i32) {
    %c0_i32 = arith.constant 0 : i32
    %c0_i32_0 = arith.constant 0 : i32
    return %c0_i32, %arg0 : i32, i32
  }
}

module attributes {stable_mosaic.version = 11 : i64} {
  func.func @_nonlinear_kernel(%arg0: i32, %arg1: memref<32x256xf32, #tpu.memory_space<vmem>>, %arg2: memref<32x32xf32, #tpu.memory_space<vmem>>, %arg3: memref<32x1xf32, #tpu.memory_space<vmem>>, %arg4: memref<16x32xf32, #tpu.memory_space<vmem>>, %arg5: memref<16x1xf32, #tpu.memory_space<vmem>>, %arg6: memref<16x256xf32, #tpu.memory_space<vmem>>) attributes {dimension_semantics = [#tpu.dimension_semantics<parallel>], iteration_bounds = array<i64: 2>, scalar_prefetch = 0 : i64, scratch_operands = 0 : i64, tpu.core_type = #tpu.core_type<tc>, window_params = [{transform_indices = @transform_0, window_bounds = array<i64: 32, 256>}, {pipeline_mode = #tpu.pipeline_mode<synchronous>, transform_indices = @transform_1, window_bounds = array<i64: 32, 32>}, {pipeline_mode = #tpu.pipeline_mode<synchronous>, transform_indices = @transform_2, window_bounds = array<i64: 32, 1>}, {pipeline_mode = #tpu.pipeline_mode<synchronous>, transform_indices = @transform_3, window_bounds = array<i64: 16, 32>}, {pipeline_mode = #tpu.pipeline_mode<synchronous>, transform_indices = @transform_4, window_bounds = array<i64: 16, 1>}, {transform_indices = @transform_5, window_bounds = array<i64: 16, 256>}]} {
    %c0 = arith.constant 0 : index
    %c0_0 = arith.constant 0 : index
    %0 = vector.load %arg2[%c0, %c0_0] : memref<32x32xf32, #tpu.memory_space<vmem>>, vector<32x32xf32>
    %c0_1 = arith.constant 0 : index
    %c0_2 = arith.constant 0 : index
    %1 = vector.load %arg1[%c0_1, %c0_2] : memref<32x256xf32, #tpu.memory_space<vmem>>, vector<32x256xf32>
    %cst = arith.constant dense<0.000000e+00> : vector<32x256xf32>
    %2 = tpu.matmul %0, %1, %cst {dimension_numbers = #tpu.dot_dimension_numbers<[1], [0], [0], [1], [0, 0, 1, 1], [], []>} : vector<32x32xf32>, vector<32x256xf32>, vector<32x256xf32> -> vector<32x256xf32>
    %c0_3 = arith.constant 0 : index
    %c0_4 = arith.constant 0 : index
    %3 = vector.load %arg3[%c0_3, %c0_4] : memref<32x1xf32, #tpu.memory_space<vmem>>, vector<32x1xf32>
    %4 = vector.broadcast %3 : vector<32x1xf32> to vector<32x256xf32>
    %5 = arith.addf %2, %4 : vector<32x256xf32>
    %cst_5 = arith.constant 5.000000e-01 : f32
    %6 = vector.broadcast %cst_5 : f32 to vector<32x256xf32>
    %7 = arith.mulf %6, %5 : vector<32x256xf32>
    %cst_6 = arith.constant 0.707106769 : f32
    %8 = vector.broadcast %cst_6 : f32 to vector<32x256xf32>
    %9 = arith.mulf %5, %8 : vector<32x256xf32>
    %10 = math.erf %9 : vector<32x256xf32>
    %cst_7 = arith.constant 1.000000e+00 : f32
    %11 = vector.broadcast %cst_7 : f32 to vector<32x256xf32>
    %12 = arith.addf %11, %10 : vector<32x256xf32>
    %13 = arith.mulf %7, %12 : vector<32x256xf32>
    %c0_8 = arith.constant 0 : index
    %c0_9 = arith.constant 0 : index
    %14 = vector.load %arg4[%c0_8, %c0_9] : memref<16x32xf32, #tpu.memory_space<vmem>>, vector<16x32xf32>
    %cst_10 = arith.constant dense<0.000000e+00> : vector<16x256xf32>
    %15 = tpu.matmul %14, %13, %cst_10 {dimension_numbers = #tpu.dot_dimension_numbers<[1], [0], [0], [1], [0, 0, 1, 1], [], []>} : vector<16x32xf32>, vector<32x256xf32>, vector<16x256xf32> -> vector<16x256xf32>
    %c0_11 = arith.constant 0 : index
    %c0_12 = arith.constant 0 : index
    %16 = vector.load %arg5[%c0_11, %c0_12] : memref<16x1xf32, #tpu.memory_space<vmem>>, vector<16x1xf32>
    %17 = vector.broadcast %16 : vector<16x1xf32> to vector<16x256xf32>
    %18 = arith.addf %15, %17 : vector<16x256xf32>
    %c0_13 = arith.constant 0 : index
    %c0_14 = arith.constant 0 : index
    %19 = vector.load %arg6[%c0_13, %c0_14] : memref<16x256xf32, #tpu.memory_space<vmem>>, vector<16x256xf32>
    tpu.vector_store %arg6[%c0_13, %c0_14], %18 {strides = array<i32>} : memref<16x256xf32, #tpu.memory_space<vmem>>, vector<16x256xf32>,
    return
  }
  func.func @transform_0(%arg0: i32) -> (i32, i32) {
    %c0_i32 = arith.constant 0 : i32
    %c0_i32_0 = arith.constant 0 : i32
    return %c0_i32, %arg0 : i32, i32
  }
  func.func @transform_1(%arg0: i32) -> (i32, i32) {
    %c0_i32 = arith.constant 0 : i32
    %c0_i32_0 = arith.constant 0 : i32
    %c0_i32_1 = arith.constant 0 : i32
    return %c0_i32, %c0_i32_0 : i32, i32
  }
  func.func @transform_2(%arg0: i32) -> (i32, i32) {
    %c0_i32 = arith.constant 0 : i32
    %c0_i32_0 = arith.constant 0 : i32
    %c0_i32_1 = arith.constant 0 : i32
    return %c0_i32, %c0_i32_0 : i32, i32
  }
  func.func @transform_3(%arg0: i32) -> (i32, i32) {
    %c0_i32 = arith.constant 0 : i32
    %c0_i32_0 = arith.constant 0 : i32
    %c0_i32_1 = arith.constant 0 : i32
    return %c0_i32, %c0_i32_0 : i32, i32
  }
  func.func @transform_4(%arg0: i32) -> (i32, i32) {
    %c0_i32 = arith.constant 0 : i32
    %c0_i32_0 = arith.constant 0 : i32
    %c0_i32_1 = arith.constant 0 : i32
    return %c0_i32, %c0_i32_0 : i32, i32
  }
  func.func @transform_5(%arg0: i32) -> (i32, i32) {
    %c0_i32 = arith.constant 0 : i32
    %c0_i32_0 = arith.constant 0 : i32
    return %c0_i32, %arg0 : i32, i32
  }
}

</mosaic_0001>

<llo_original>
// kernel: tpu_custom_call.1
$region0: #{tpu_custom_call.1}
  #allocation0 [shape = 'u32[]', space=smem, size = 0x4, offset = 0x4, fixed_abs, tag = 'smem constant byte address 0x4 - core index']
  #allocation1 [shape = 'u32[72,128]{1,0:T(1,128)}', space=vmem, size = 0x9000, scoped, tag = 'internal scratch']
  %s0 = inlined_call_operand.hbm [shape: f32[32,512], index: 0, kind: input, shape index: {}]
  %s1 = inlined_call_operand.vmem [shape: f32[32,32], index: 1, kind: input, shape index: {}]
  %s2 = inlined_call_operand.vmem [shape: f32[32,1], index: 2, kind: input, shape index: {}]
  %s3 = inlined_call_operand.vmem [shape: f32[16,32], index: 3, kind: input, shape index: {}]
  %s4 = inlined_call_operand.vmem [shape: f32[16,1], index: 4, kind: input, shape index: {}]
  %s5 = inlined_call_operand.hbm [shape: f32[16,512], index: 5, kind: output, shape index: {}]
  %s6 = sld [smem:[#allocation0]]
  $region57: #{tpu_custom_call.1} parent=0
    _
  %s8 = ssub.s32 1, %s6
  %s9 = scalar_select 0, %s8, %s6
  $region1: #{tpu_custom_call.1} parent=0
    #allocation2 [shape = 'u8[65536]{0}', space=vmem, size = 0x10000, scoped, tag = 'input window, operand 0']
    #allocation3 [shape = 's32[2]{0}', space=sflag, size = 0x8, scoped, tag = 'scoped memory for tpu_custom_call.1']
    #allocation4 [shape = 's32[2]{0}', space=sflag, size = 0x8, scoped, tag = 'scoped memory for tpu_custom_call.1']
    #allocation5 [shape = 'u8[32768]{0}', space=vmem, size = 0x8000, scoped, tag = 'output window, operand 0']
    %10 = vsyncpa [#allocation3], 0
    %s11 = scalar_lea.sflag [#allocation3], 1
    %12 = vsyncpa %s11, 0
    %13 = vsyncpa [#allocation4], 0
    %s14 = scalar_lea.sflag [#allocation4], 1
    %15 = vsyncpa %s14, 0
    loop: start=0, step=1, limit=4
    $region2: #{tpu_custom_call.1} parent=1 // loop_pre_header
      _
    $region3: #{tpu_custom_call.1} parent=1 // loop_header
      %s17 = sphi 0, %s21
      %p18 = scmp.ge.s32.totalorder %s17, 4
      %s27 = sphi 0, %s29
      %s30 = sphi 0, %s27
      %s31 = sphi 0, %s30
      %s47 = sphi 0, %s31
      %s51 = sphi 0, %s51
      %s53 = sphi 0, %s51
      %s54 = sphi 0, %s53
      %s68 = sphi 0, %s54
      %s72 = sphi 0, %s72
      %s74 = sphi 0, %s72
      %s75 = sphi 0, %s74
      %s89 = sphi 0, %s75
      %s93 = sphi 0, %s93
      %s95 = sphi 0, %s93
      %s96 = sphi 0, %s95
      %s110 = sphi 0, %s96
      %s114 = sphi 0, %s114
      %s116 = sphi 0, %s114
      %s117 = sphi 0, %s116
      %s131 = sphi 0, %s117
      %s137 = sphi 0, %s139
      %s140 = sphi 0, %s137
      %s141 = sphi 0, %s140
      %s157 = sphi 0, %s141
    $region4: #{tpu_custom_call.1} parent=1 // loop_header_branch
      %20 = sbr.rel (%p18) target = $region8
    $region5: #{tpu_custom_call.1} parent=1 // loop_body
      %s22 = ssub.s32 %s17, 1
      %s23 = ssub.s32 %s17, 2
      %s24 = sadd.s32 %s17, 1
      %s25 = ssub.s32 %s17, %s24
      %p26 = scmp.eq.s32.totalorder %s25, 0
      %s28 = sadd.s32 %s27, 1
      %s29 = scalar_select %p26, %s27, %s28
      %p32 = pneg %p26
      %p33 = scmp.eq.s32.totalorder %s17, 1
      %p34 = por %p32, %p33
      %p35 = scmp.ne.s32.totalorder %s27, %s30
      %p36 = scmp.eq.s32.totalorder %s17, 0
      %p37 = por %p35, %p36
      %p38 = scmp.ne.s32.totalorder %s27, %s30
      %p39 = scmp.eq.s32.totalorder %s22, 1
      %p40 = por %p38, %p39
      %p41 = scmp.ne.s32.totalorder %s30, %s31
      %p42 = scmp.eq.s32.totalorder %s22, 0
      %p43 = por %p41, %p42
      %p44 = scmp.ne.s32.totalorder %s30, %s31
      %p45 = scmp.eq.s32.totalorder %s23, 1
      %p46 = por %p44, %p45
      %p48 = scmp.ne.s32.totalorder %s31, %s47
      %p49 = scmp.eq.s32.totalorder %s23, 0
      %p50 = por %p48, %p49
      %s52 = sadd.s32 %s51, 1
      %p55 = scmp.eq.s32.totalorder %s17, 1
      %p56 = scmp.ne.s32.totalorder %s51, %s53
      %p57 = scmp.eq.s32.totalorder %s17, 0
      %p58 = por %p56, %p57
      %p59 = scmp.ne.s32.totalorder %s51, %s53
      %p60 = scmp.eq.s32.totalorder %s22, 1
      %p61 = por %p59, %p60
      %p62 = scmp.ne.s32.totalorder %s53, %s54
      %p63 = scmp.eq.s32.totalorder %s22, 0
      %p64 = por %p62, %p63
      %p65 = scmp.ne.s32.totalorder %s53, %s54
      %p66 = scmp.eq.s32.totalorder %s23, 1
      %p67 = por %p65, %p66
      %p69 = scmp.ne.s32.totalorder %s54, %s68
      %p70 = scmp.eq.s32.totalorder %s23, 0
      %p71 = por %p69, %p70
      %s73 = sadd.s32 %s72, 1
      %p76 = scmp.eq.s32.totalorder %s17, 1
      %p77 = scmp.ne.s32.totalorder %s72, %s74
      %p78 = scmp.eq.s32.totalorder %s17, 0
      %p79 = por %p77, %p78
      %p80 = scmp.ne.s32.totalorder %s72, %s74
      %p81 = scmp.eq.s32.totalorder %s22, 1
      %p82 = por %p80, %p81
      %p83 = scmp.ne.s32.totalorder %s74, %s75
      %p84 = scmp.eq.s32.totalorder %s22, 0
      %p85 = por %p83, %p84
      %p86 = scmp.ne.s32.totalorder %s74, %s75
      %p87 = scmp.eq.s32.totalorder %s23, 1
      %p88 = por %p86, %p87
      %p90 = scmp.ne.s32.totalorder %s75, %s89
      %p91 = scmp.eq.s32.totalorder %s23, 0
      %p92 = por %p90, %p91
      %s94 = sadd.s32 %s93, 1
      %p97 = scmp.eq.s32.totalorder %s17, 1
      %p98 = scmp.ne.s32.totalorder %s93, %s95
      %p99 = scmp.eq.s32.totalorder %s17, 0
      %p100 = por %p98, %p99
      %p101 = scmp.ne.s32.totalorder %s93, %s95
      %p102 = scmp.eq.s32.totalorder %s22, 1
      %p103 = por %p101, %p102
      %p104 = scmp.ne.s32.totalorder %s95, %s96
      %p105 = scmp.eq.s32.totalorder %s22, 0
      %p106 = por %p104, %p105
      %p107 = scmp.ne.s32.totalorder %s95, %s96
      %p108 = scmp.eq.s32.totalorder %s23, 1
      %p109 = por %p107, %p108
      %p111 = scmp.ne.s32.totalorder %s96, %s110
      %p112 = scmp.eq.s32.totalorder %s23, 0
      %p113 = por %p111, %p112
      %s115 = sadd.s32 %s114, 1
      %p118 = scmp.eq.s32.totalorder %s17, 1
      %p119 = scmp.ne.s32.totalorder %s114, %s116
      %p120 = scmp.eq.s32.totalorder %s17, 0
      %p121 = por %p119, %p120
      %p122 = scmp.ne.s32.totalorder %s114, %s116
      %p123 = scmp.eq.s32.totalorder %s22, 1
      %p124 = por %p122, %p123
      %p125 = scmp.ne.s32.totalorder %s116, %s117
      %p126 = scmp.eq.s32.totalorder %s22, 0
      %p127 = por %p125, %p126
      %p128 = scmp.ne.s32.totalorder %s116, %s117
      %p129 = scmp.eq.s32.totalorder %s23, 1
      %p130 = por %p128, %p129
      %p132 = scmp.ne.s32.totalorder %s117, %s131
      %p133 = scmp.eq.s32.totalorder %s23, 0
      %p134 = por %p132, %p133
      %s135 = ssub.s32 %s17, %s24
      %p136 = scmp.eq.s32.totalorder %s135, 0
      %s138 = sadd.s32 %s137, 1
      %s139 = scalar_select %p136, %s137, %s138
      %p142 = pneg %p136
      %p143 = scmp.eq.s32.totalorder %s17, 1
      %p144 = por %p142, %p143
      %p145 = scmp.ne.s32.totalorder %s137, %s140
      %p146 = scmp.eq.s32.totalorder %s17, 0
      %p147 = por %p145, %p146
      %p148 = scmp.ne.s32.totalorder %s137, %s140
      %p149 = scmp.eq.s32.totalorder %s22, 1
      %p150 = por %p148, %p149
      %p151 = scmp.ne.s32.totalorder %s140, %s141
      %p152 = scmp.eq.s32.totalorder %s22, 0
      %p153 = por %p151, %p152
      %p154 = scmp.ne.s32.totalorder %s140, %s141
      %p155 = scmp.eq.s32.totalorder %s23, 1
      %p156 = por %p154, %p155
      %p158 = scmp.ne.s32.totalorder %s141, %s157
      %p159 = scmp.eq.s32.totalorder %s23, 0
      %p160 = por %p158, %p159
      %p161 = scmp.le.s32.totalorder 1, %s17
      %p162 = scmp.lt.s32.totalorder %s17, 3
      %p163 = pnand %p161, %p162
      %p164 = pneg %p163
      // Predicated region
      $region9: #{tpu_custom_call.1} parent=5 // pred_check
        _
      $region10: #{tpu_custom_call.1} parent=5 // pred_check_branch
        %166 = sbr.rel (%p163) target = $region12
      $region11: #{tpu_custom_call.1} parent=5 // pred_region
        %s167 = ssub.s32 %s17, 1
        // Predicated region
        $region13: #{tpu_custom_call.1} parent=11 // pred_check
          %p168 = pneg %p64
        $region14: #{tpu_custom_call.1} parent=11 // pred_check_branch
          %170 = sbr.rel (%p168) target = $region16
        $region15: #{tpu_custom_call.1} parent=11 // pred_region
          _
        $region16: #{tpu_custom_call.1} parent=11 // pred_fallthru
          _
        // Predicated region
        $region17: #{tpu_custom_call.1} parent=11 // pred_check
          %p171 = pneg %p85
        $region18: #{tpu_custom_call.1} parent=11 // pred_check_branch
          %173 = sbr.rel (%p171) target = $region20
        $region19: #{tpu_custom_call.1} parent=11 // pred_region
          _
        $region20: #{tpu_custom_call.1} parent=11 // pred_fallthru
          _
        // Predicated region
        $region21: #{tpu_custom_call.1} parent=11 // pred_check
          %p174 = pneg %p106
        $region22: #{tpu_custom_call.1} parent=11 // pred_check_branch
          %176 = sbr.rel (%p174) target = $region24
        $region23: #{tpu_custom_call.1} parent=11 // pred_region
          _
        $region24: #{tpu_custom_call.1} parent=11 // pred_fallthru
          _
        // Predicated region
        $region25: #{tpu_custom_call.1} parent=11 // pred_check
          %p177 = pneg %p127
        $region26: #{tpu_custom_call.1} parent=11 // pred_check_branch
          %179 = sbr.rel (%p177) target = $region28
        $region27: #{tpu_custom_call.1} parent=11 // pred_region
          _
        $region28: #{tpu_custom_call.1} parent=11 // pred_fallthru
          _
      $region12: #{tpu_custom_call.1} parent=5 // pred_fallthru
        _
      %p180 = scmp.lt.s32.totalorder %s17, 2
      // Predicated region
      $region29: #{tpu_custom_call.1} parent=5 // pred_check
        %p181 = pneg %p180
      $region30: #{tpu_custom_call.1} parent=5 // pred_check_branch
        %183 = sbr.rel (%p181) target = $region32
      $region31: #{tpu_custom_call.1} parent=5 // pred_region
        // Predicated region
        $region33: #{tpu_custom_call.1} parent=31 // pred_check
          %p184 = pneg %p37
        $region34: #{tpu_custom_call.1} parent=31 // pred_check_branch
          %186 = sbr.rel (%p184) target = $region36
        $region35: #{tpu_custom_call.1} parent=31 // pred_region
          %s187 = sand.u32 %s27, 1
          %s188 = scalar_lea.sflag [#allocation3], %s187
          %s189 = sand.u32 %s27, 1
          %s190 = smul.addr %s189, 64
          %s191 = scalar_lea.vmem [#allocation2], %s190
          %s192 = smul.u32 2, %s17
          %194 = vsyncadd %s188, 0
          %s195 = smul.addr %s192, 8
          %s196 = scalar_lea.hbm %s0, %s195
          %s197 = sshll.u32 %s196, 4
          %s198 = int_to_ptr.hbm [resolvable:$true] %s197
          %s199 = sshll.u32 %s191, 4
          %s200 = int_to_ptr.vmem [resolvable:$true] %s199
          %205 = dma.hbm_to_vmem [thread:$0]  %s198, 1024, %s200, %s188, 512, 256, 16
        $region36: #{tpu_custom_call.1} parent=31 // pred_fallthru
          _
      $region32: #{tpu_custom_call.1} parent=5 // pred_fallthru
        _
      %p206 = scmp.le.s32.totalorder 1, %s17
      %p207 = scmp.lt.s32.totalorder %s17, 3
      %p208 = pnand %p206, %p207
      %p209 = pneg %p208
      // Predicated region
      $region37: #{tpu_custom_call.1} parent=5 // pred_check
        _
      $region38: #{tpu_custom_call.1} parent=5 // pred_check_branch
        %211 = sbr.rel (%p208) target = $region40
      $region39: #{tpu_custom_call.1} parent=5 // pred_region
        %s212 = ssub.s32 %s17, 1
        %s213 = sand.u32 %s30, 1
        %s214 = scalar_lea.sflag [#allocation3], %s213
        %s215 = sand.u32 %s30, 1
        %s216 = smul.addr %s215, 64
        %s217 = scalar_lea.vmem [#allocation2], %s216
        // Predicated region
        $region41: #{tpu_custom_call.1} parent=39 // pred_check
          %p218 = pneg %p43
        $region42: #{tpu_custom_call.1} parent=39 // pred_check_branch
          %220 = sbr.rel (%p218) target = $region44
        $region43: #{tpu_custom_call.1} parent=39 // pred_region
          %222 = dma.done %s214, 1024
        $region44: #{tpu_custom_call.1} parent=39 // pred_fallthru
          _
        %s223 = sand.u32 %s30, 1
        %s224 = scalar_lea.sflag [#allocation3], %s223
        %s225 = sand.u32 %s30, 1
        %s226 = smul.addr %s225, 64
        %s227 = scalar_lea.vmem [#allocation2], %s226
        %p228 = pneg %p43
        %p229 = pneg %p40
        %p230 = pneg %p64
        %p231 = pneg %p61
        %p232 = pneg %p85
        %p233 = pneg %p82
        %p234 = pneg %p106
        %p235 = pneg %p103
        %p236 = pneg %p127
        %p237 = pneg %p124
        %p238 = pneg %p153
        %p239 = pneg %p150
        %s240 = sand.u32 %s140, 1
        %s241 = scalar_lea.sflag [#allocation4], %s240
        %s242 = sand.u32 %s140, 1
        %s243 = smul.addr %s242, 32
        %s244 = scalar_lea.vmem [#allocation5], %s243
        %s245 = smul.u32 2, %s22
        %s246 = smul.u32 2, %s22
        %v247 = vld [vmem:[%s1] sm:$0xff]
        %v248 = vld [vmem:[%s1 + $0x8] sm:$0xff]
        %v249 = vld [vmem:[%s1 + $0x10] sm:$0xff]
        %v250 = vld [vmem:[%s1 + $0x18] sm:$0xff]
        %v251 = vld [vmem:[%s217] sm:$0xff]
        %v252 = vld [vmem:[%s217 + $0x8] sm:$0xff]
        %v253 = vld [vmem:[%s217 + $0x10] sm:$0xff]
        %v254 = vld [vmem:[%s217 + $0x18] sm:$0xff]
        %v255 = vld [vmem:[%s217 + $0x20] sm:$0xff]
        %v256 = vld [vmem:[%s217 + $0x28] sm:$0xff]
        %v257 = vld [vmem:[%s217 + $0x30] sm:$0xff]
        %v258 = vld [vmem:[%s217 + $0x38] sm:$0xff]
        %v259 = vld [vmem:[%s2] sm:$0xff]
        %v260 = vld [vmem:[%s2 + $0x8] sm:$0xff]
        %v261 = vld [vmem:[%s2 + $0x10] sm:$0xff]
        %v262 = vld [vmem:[%s2 + $0x18] sm:$0xff]
        %264 = vset.pattern.permute.xlu0 0
        %265 = vperm.xlu0 %264, %v259
        %v266 = vpop.permute.xlu0 %265
        %269 = vset.pattern.permute.xlu0 0
        %270 = vperm.xlu0 %269, %v260
        %v271 = vpop.permute.xlu0 %270
        %274 = vset.pattern.permute.xlu0 0
        %275 = vperm.xlu0 %274, %v261
        %v276 = vpop.permute.xlu0 %275
        %279 = vset.pattern.permute.xlu0 0
        %280 = vperm.xlu0 %279, %v262
        %v281 = vpop.permute.xlu0 %280
        %vm283 = vcmask 261120
        %v285 = vsel %vm283, %v247, 0
        %v288 = vsel %vm283, %v248, 0
        %v291 = vsel %vm283, %v249, 0
        %v294 = vsel %vm283, %v250, 0
        %296 = vmatpush.msra.mxu0 0.0
        %297 = vmatpush.msra.mxu0 0.0
        %298 = vmatpush.msra.mxu0 0.0
        %299 = vmatpush.msra.mxu0 0.0
        %300 = vmatpush.msra.mxu0 0.0
        %301 = vmatpush.msra.mxu0 0.0
        %302 = vmatpush.msra.mxu0 0.0
        %303 = vmatpush.msra.mxu0 0.0
        %304 = vmatpush.msra.mxu0 0.0
        %305 = vmatpush.msra.mxu0 0.0
        %306 = vmatpush.msra.mxu0 0.0
        %307 = vmatpush.msra.mxu0 0.0
        %308 = vmatpush.msra.mxu0 %v257
        %309 = vmatpush.msra.mxu0 %v255
        %310 = vmatpush.msra.mxu0 %v253
        %311 = vmatpush.msra.mxu0 %v251
        %312 = vmatmul.f32.gmra.mxu0 %v285
        %v313 = vpop.f32.mrf.mxu0
        %v314 = vadd.f32 %v266, %v313
        %315 = vmatmul.f32.gmra.mxu0 %v288
        %v316 = vpop.f32.mrf.mxu0
        %v317 = vadd.f32 %v271, %v316
        %318 = vmatmul.f32.gmra.mxu0 %v291
        %v319 = vpop.f32.mrf.mxu0
        %v320 = vadd.f32 %v276, %v319
        %321 = vmatmul.f32.gmra.mxu0 %v294
        %v322 = vpop.f32.mrf.mxu0
        %v323 = vadd.f32 %v281, %v322
        %324 = vdwg.mxu0
        %325 = vmatpush.msra.mxu0 0.0
        %326 = vmatpush.msra.mxu0 0.0
        %327 = vmatpush.msra.mxu0 0.0
        %328 = vmatpush.msra.mxu0 0.0
        %329 = vmatpush.msra.mxu0 0.0
        %330 = vmatpush.msra.mxu0 0.0
        %331 = vmatpush.msra.mxu0 0.0
        %332 = vmatpush.msra.mxu0 0.0
        %333 = vmatpush.msra.mxu0 0.0
        %334 = vmatpush.msra.mxu0 0.0
        %335 = vmatpush.msra.mxu0 0.0
        %336 = vmatpush.msra.mxu0 0.0
        %337 = vmatpush.msra.mxu0 %v258
        %338 = vmatpush.msra.mxu0 %v256
        %339 = vmatpush.msra.mxu0 %v254
        %340 = vmatpush.msra.mxu0 %v252
        %341 = vmatmul.f32.gmra.mxu0 %v285
        %v342 = vpop.f32.mrf.mxu0
        %v343 = vadd.f32 %v266, %v342
        %344 = vmatmul.f32.gmra.mxu0 %v288
        %v345 = vpop.f32.mrf.mxu0
        %v346 = vadd.f32 %v271, %v345
        %347 = vmatmul.f32.gmra.mxu0 %v291
        %v348 = vpop.f32.mrf.mxu0
        %v349 = vadd.f32 %v276, %v348
        %350 = vmatmul.f32.gmra.mxu0 %v294
        %v351 = vpop.f32.mrf.mxu0
        %v352 = vadd.f32 %v281, %v351
        %353 = vdwg.mxu0
        %v354 = vmul.f32 %v314, 0.5
        %v355 = vmul.f32 %v343, 0.5
        %v356 = vmul.f32 %v317, 0.5
        %v357 = vmul.f32 %v346, 0.5
        %v358 = vmul.f32 %v320, 0.5
        %v359 = vmul.f32 %v349, 0.5
        %v360 = vmul.f32 %v323, 0.5
        %v361 = vmul.f32 %v352, 0.5
        %v362 = vmul.f32 %v314, 0.70710677
        %v363 = vmul.f32 %v343, 0.70710677
        %v364 = vmul.f32 %v317, 0.70710677
        %v365 = vmul.f32 %v346, 0.70710677
        %v366 = vmul.f32 %v320, 0.70710677
        %v367 = vmul.f32 %v349, 0.70710677
        %v368 = vmul.f32 %v323, 0.70710677
        %v369 = vmul.f32 %v352, 0.70710677
        %v370 = vmul.f32 %v362, %v362
        %v371 = vmin.f32 16.0, %v370
        %v372 = vmul.f32 %v371, 2.1237322e-06
        %v373 = vadd.f32 %v372, 0.00028619796
        %v374 = vmul.f32 %v371, %v373
        %v375 = vadd.f32 %v374, 0.0036580483
        %v376 = vmul.f32 %v371, %v375
        %v377 = vadd.f32 %v376, 0.05243302
        %v378 = vmul.f32 %v371, %v377
        %v379 = vadd.f32 %v378, 0.18741608
        %v380 = vmul.f32 %v371, %v379
        %v381 = vadd.f32 %v380, 1.1283791
        %v382 = vmul.f32 %v362, %v381
        %v383 = vmul.f32 %v371, 3.8918573e-05
        %v384 = vadd.f32 %v383, 0.001143296
        %v385 = vmul.f32 %v371, %v384
        %v386 = vadd.f32 %v385, 0.014752088
        %v387 = vmul.f32 %v371, %v386
        %v388 = vadd.f32 %v387, 0.112945676
        %v389 = vmul.f32 %v371, %v388
        %v390 = vadd.f32 %v389, 0.4994258
        %v391 = vmul.f32 %v371, %v390
        %v392 = vadd.f32 %v391, 1.0
        %v393 = vrcp.pop %v392
        %v394 = vmul.f32 %v392, %v393
        %v395 = vsub.f32 1.0, %v394
        %v396 = vmul.f32 %v393, %v395
        %v397 = vadd.f32 %v393, %v396
        %vm398 = vweird.f32 %v392
        %vm399 = vweird.f32 %v393
        %vm400 = vmor %vm398, %vm399
        %v401 = vsel %vm400, %v393, %v397
        %v402 = vand.u32 2147483647, %v392
        %vm403 = vcmp.eq.f32.partialorder %v402, 8.507059e+37
        %v404 = vand.u32 %v392, 2147483648
        %v405 = vor.u32 1.1754944e-38, %v404
        %v406 = vsel %vm403, %v405, %v401
        %v407 = vmul.f32 %v382, %v406
        %v408 = vmin.f32 %v407, 1.0
        %v409 = vmax.f32 %v408, -1.0
        %v410 = vmul.f32 %v363, %v363
        %v411 = vmin.f32 16.0, %v410
        %v412 = vmul.f32 %v411, 2.1237322e-06
        %v413 = vadd.f32 %v412, 0.00028619796
        %v414 = vmul.f32 %v411, %v413
        %v415 = vadd.f32 %v414, 0.0036580483
        %v416 = vmul.f32 %v411, %v415
        %v417 = vadd.f32 %v416, 0.05243302
        %v418 = vmul.f32 %v411, %v417
        %v419 = vadd.f32 %v418, 0.18741608
        %v420 = vmul.f32 %v411, %v419
        %v421 = vadd.f32 %v420, 1.1283791
        %v422 = vmul.f32 %v363, %v421
        %v423 = vmul.f32 %v411, 3.8918573e-05
        %v424 = vadd.f32 %v423, 0.001143296
        %v425 = vmul.f32 %v411, %v424
        %v426 = vadd.f32 %v425, 0.014752088
        %v427 = vmul.f32 %v411, %v426
        %v428 = vadd.f32 %v427, 0.112945676
        %v429 = vmul.f32 %v411, %v428
        %v430 = vadd.f32 %v429, 0.4994258
        %v431 = vmul.f32 %v411, %v430
        %v432 = vadd.f32 %v431, 1.0
        %v433 = vrcp.pop %v432
        %v434 = vmul.f32 %v432, %v433
        %v435 = vsub.f32 1.0, %v434
        %v436 = vmul.f32 %v433, %v435
        %v437 = vadd.f32 %v433, %v436
        %vm438 = vweird.f32 %v432
        %vm439 = vweird.f32 %v433
        %vm440 = vmor %vm438, %vm439
        %v441 = vsel %vm440, %v433, %v437
        %v442 = vand.u32 2147483647, %v432
        %vm443 = vcmp.eq.f32.partialorder %v442, 8.507059e+37
        %v444 = vand.u32 %v432, 2147483648
        %v445 = vor.u32 1.1754944e-38, %v444
        %v446 = vsel %vm443, %v445, %v441
        %v447 = vmul.f32 %v422, %v446
        %v448 = vmin.f32 %v447, 1.0
        %v449 = vmax.f32 %v448, -1.0
        %v450 = vmul.f32 %v364, %v364
        %v451 = vmin.f32 16.0, %v450
        %v452 = vmul.f32 %v451, 2.1237322e-06
        %v453 = vadd.f32 %v452, 0.00028619796
        %v454 = vmul.f32 %v451, %v453
        %v455 = vadd.f32 %v454, 0.0036580483
        %v456 = vmul.f32 %v451, %v455
        %v457 = vadd.f32 %v456, 0.05243302
        %v458 = vmul.f32 %v451, %v457
        %v459 = vadd.f32 %v458, 0.18741608
        %v460 = vmul.f32 %v451, %v459
        %v461 = vadd.f32 %v460, 1.1283791
        %v462 = vmul.f32 %v364, %v461
        %v463 = vmul.f32 %v451, 3.8918573e-05
        %v464 = vadd.f32 %v463, 0.001143296
        %v465 = vmul.f32 %v451, %v464
        %v466 = vadd.f32 %v465, 0.014752088
        %v467 = vmul.f32 %v451, %v466
        %v468 = vadd.f32 %v467, 0.112945676
        %v469 = vmul.f32 %v451, %v468
        %v470 = vadd.f32 %v469, 0.4994258
        %v471 = vmul.f32 %v451, %v470
        %v472 = vadd.f32 %v471, 1.0
        %v473 = vrcp.pop %v472
        %v474 = vmul.f32 %v472, %v473
        %v475 = vsub.f32 1.0, %v474
        %v476 = vmul.f32 %v473, %v475
        %v477 = vadd.f32 %v473, %v476
        %vm478 = vweird.f32 %v472
        %vm479 = vweird.f32 %v473
        %vm480 = vmor %vm478, %vm479
        %v481 = vsel %vm480, %v473, %v477
        %v482 = vand.u32 2147483647, %v472
        %vm483 = vcmp.eq.f32.partialorder %v482, 8.507059e+37
        %v484 = vand.u32 %v472, 2147483648
        %v485 = vor.u32 1.1754944e-38, %v484
        %v486 = vsel %vm483, %v485, %v481
        %v487 = vmul.f32 %v462, %v486
        %v488 = vmin.f32 %v487, 1.0
        %v489 = vmax.f32 %v488, -1.0
        %v490 = vmul.f32 %v365, %v365
        %v491 = vmin.f32 16.0, %v490
        %v492 = vmul.f32 %v491, 2.1237322e-06
        %v493 = vadd.f32 %v492, 0.00028619796
        %v494 = vmul.f32 %v491, %v493
        %v495 = vadd.f32 %v494, 0.0036580483
        %v496 = vmul.f32 %v491, %v495
        %v497 = vadd.f32 %v496, 0.05243302
        %v498 = vmul.f32 %v491, %v497
        %v499 = vadd.f32 %v498, 0.18741608
        %v500 = vmul.f32 %v491, %v499
        %v501 = vadd.f32 %v500, 1.1283791
        %v502 = vmul.f32 %v365, %v501
        %v503 = vmul.f32 %v491, 3.8918573e-05
        %v504 = vadd.f32 %v503, 0.001143296
        %v505 = vmul.f32 %v491, %v504
        %v506 = vadd.f32 %v505, 0.014752088
        %v507 = vmul.f32 %v491, %v506
        %v508 = vadd.f32 %v507, 0.112945676
        %v509 = vmul.f32 %v491, %v508
        %v510 = vadd.f32 %v509, 0.4994258
        %v511 = vmul.f32 %v491, %v510
        %v512 = vadd.f32 %v511, 1.0
        %v513 = vrcp.pop %v512
        %v514 = vmul.f32 %v512, %v513
        %v515 = vsub.f32 1.0, %v514
        %v516 = vmul.f32 %v513, %v515
        %v517 = vadd.f32 %v513, %v516
        %vm518 = vweird.f32 %v512
        %vm519 = vweird.f32 %v513
        %vm520 = vmor %vm518, %vm519
        %v521 = vsel %vm520, %v513, %v517
        %v522 = vand.u32 2147483647, %v512
        %vm523 = vcmp.eq.f32.partialorder %v522, 8.507059e+37
        %v524 = vand.u32 %v512, 2147483648
        %v525 = vor.u32 1.1754944e-38, %v524
        %v526 = vsel %vm523, %v525, %v521
        %v527 = vmul.f32 %v502, %v526
        %v528 = vmin.f32 %v527, 1.0
        %v529 = vmax.f32 %v528, -1.0
        %v530 = vmul.f32 %v366, %v366
        %v531 = vmin.f32 16.0, %v530
        %v532 = vmul.f32 %v531, 2.1237322e-06
        %v533 = vadd.f32 %v532, 0.00028619796
        %v534 = vmul.f32 %v531, %v533
        %v535 = vadd.f32 %v534, 0.0036580483
        %v536 = vmul.f32 %v531, %v535
        %v537 = vadd.f32 %v536, 0.05243302
        %v538 = vmul.f32 %v531, %v537
        %v539 = vadd.f32 %v538, 0.18741608
        %v540 = vmul.f32 %v531, %v539
        %v541 = vadd.f32 %v540, 1.1283791
        %v542 = vmul.f32 %v366, %v541
        %v543 = vmul.f32 %v531, 3.8918573e-05
        %v544 = vadd.f32 %v543, 0.001143296
        %v545 = vmul.f32 %v531, %v544
        %v546 = vadd.f32 %v545, 0.014752088
        %v547 = vmul.f32 %v531, %v546
        %v548 = vadd.f32 %v547, 0.112945676
        %v549 = vmul.f32 %v531, %v548
        %v550 = vadd.f32 %v549, 0.4994258
        %v551 = vmul.f32 %v531, %v550
        %v552 = vadd.f32 %v551, 1.0
        %v553 = vrcp.pop %v552
        %v554 = vmul.f32 %v552, %v553
        %v555 = vsub.f32 1.0, %v554
        %v556 = vmul.f32 %v553, %v555
        %v557 = vadd.f32 %v553, %v556
        %vm558 = vweird.f32 %v552
        %vm559 = vweird.f32 %v553
        %vm560 = vmor %vm558, %vm559
        %v561 = vsel %vm560, %v553, %v557
        %v562 = vand.u32 2147483647, %v552
        %vm563 = vcmp.eq.f32.partialorder %v562, 8.507059e+37
        %v564 = vand.u32 %v552, 2147483648
        %v565 = vor.u32 1.1754944e-38, %v564
        %v566 = vsel %vm563, %v565, %v561
        %v567 = vmul.f32 %v542, %v566
        %v568 = vmin.f32 %v567, 1.0
        %v569 = vmax.f32 %v568, -1.0
        %v570 = vmul.f32 %v367, %v367
        %v571 = vmin.f32 16.0, %v570
        %v572 = vmul.f32 %v571, 2.1237322e-06
        %v573 = vadd.f32 %v572, 0.00028619796
        %v574 = vmul.f32 %v571, %v573
        %v575 = vadd.f32 %v574, 0.0036580483
        %v576 = vmul.f32 %v571, %v575
        %v577 = vadd.f32 %v576, 0.05243302
        %v578 = vmul.f32 %v571, %v577
        %v579 = vadd.f32 %v578, 0.18741608
        %v580 = vmul.f32 %v571, %v579
        %v581 = vadd.f32 %v580, 1.1283791
        %v582 = vmul.f32 %v367, %v581
        %v583 = vmul.f32 %v571, 3.8918573e-05
        %v584 = vadd.f32 %v583, 0.001143296
        %v585 = vmul.f32 %v571, %v584
        %v586 = vadd.f32 %v585, 0.014752088
        %v587 = vmul.f32 %v571, %v586
        %v588 = vadd.f32 %v587, 0.112945676
        %v589 = vmul.f32 %v571, %v588
        %v590 = vadd.f32 %v589, 0.4994258
        %v591 = vmul.f32 %v571, %v590
        %v592 = vadd.f32 %v591, 1.0
        %v593 = vrcp.pop %v592
        %v594 = vmul.f32 %v592, %v593
        %v595 = vsub.f32 1.0, %v594
        %v596 = vmul.f32 %v593, %v595
        %v597 = vadd.f32 %v593, %v596
        %vm598 = vweird.f32 %v592
        %vm599 = vweird.f32 %v593
        %vm600 = vmor %vm598, %vm599
        %v601 = vsel %vm600, %v593, %v597
        %v602 = vand.u32 2147483647, %v592
        %vm603 = vcmp.eq.f32.partialorder %v602, 8.507059e+37
        %v604 = vand.u32 %v592, 2147483648
        %v605 = vor.u32 1.1754944e-38, %v604
        %v606 = vsel %vm603, %v605, %v601
        %v607 = vmul.f32 %v582, %v606
        %v608 = vmin.f32 %v607, 1.0
        %v609 = vmax.f32 %v608, -1.0
        %v610 = vmul.f32 %v368, %v368
        %v611 = vmin.f32 16.0, %v610
        %v612 = vmul.f32 %v611, 2.1237322e-06
        %v613 = vadd.f32 %v612, 0.00028619796
        %v614 = vmul.f32 %v611, %v613
        %v615 = vadd.f32 %v614, 0.0036580483
        %v616 = vmul.f32 %v611, %v615
        %v617 = vadd.f32 %v616, 0.05243302
        %v618 = vmul.f32 %v611, %v617
        %v619 = vadd.f32 %v618, 0.18741608
        %v620 = vmul.f32 %v611, %v619
        %v621 = vadd.f32 %v620, 1.1283791
        %v622 = vmul.f32 %v368, %v621
        %v623 = vmul.f32 %v611, 3.8918573e-05
        %v624 = vadd.f32 %v623, 0.001143296
        %v625 = vmul.f32 %v611, %v624
        %v626 = vadd.f32 %v625, 0.014752088
        %v627 = vmul.f32 %v611, %v626
        %v628 = vadd.f32 %v627, 0.112945676
        %v629 = vmul.f32 %v611, %v628
        %v630 = vadd.f32 %v629, 0.4994258
        %v631 = vmul.f32 %v611, %v630
        %v632 = vadd.f32 %v631, 1.0
        %v633 = vrcp.pop %v632
        %v634 = vmul.f32 %v632, %v633
        %v635 = vsub.f32 1.0, %v634
        %v636 = vmul.f32 %v633, %v635
        %v637 = vadd.f32 %v633, %v636
        %vm638 = vweird.f32 %v632
        %vm639 = vweird.f32 %v633
        %vm640 = vmor %vm638, %vm639
        %v641 = vsel %vm640, %v633, %v637
        %v642 = vand.u32 2147483647, %v632
        %vm643 = vcmp.eq.f32.partialorder %v642, 8.507059e+37
        %v644 = vand.u32 %v632, 2147483648
        %v645 = vor.u32 1.1754944e-38, %v644
        %v646 = vsel %vm643, %v645, %v641
        %v647 = vmul.f32 %v622, %v646
        %v648 = vmin.f32 %v647, 1.0
        %v649 = vmax.f32 %v648, -1.0
        %v650 = vmul.f32 %v369, %v369
        %v651 = vmin.f32 16.0, %v650
        %v652 = vmul.f32 %v651, 2.1237322e-06
        %v653 = vadd.f32 %v652, 0.00028619796
        %v654 = vmul.f32 %v651, %v653
        %v655 = vadd.f32 %v654, 0.0036580483
        %v656 = vmul.f32 %v651, %v655
        %v657 = vadd.f32 %v656, 0.05243302
        %v658 = vmul.f32 %v651, %v657
        %v659 = vadd.f32 %v658, 0.18741608
        %v660 = vmul.f32 %v651, %v659
        %v661 = vadd.f32 %v660, 1.1283791
        %v662 = vmul.f32 %v369, %v661
        %v663 = vmul.f32 %v651, 3.8918573e-05
        %v664 = vadd.f32 %v663, 0.001143296
        %v665 = vmul.f32 %v651, %v664
        %v666 = vadd.f32 %v665, 0.014752088
        %v667 = vmul.f32 %v651, %v666
        %v668 = vadd.f32 %v667, 0.112945676
        %v669 = vmul.f32 %v651, %v668
        %v670 = vadd.f32 %v669, 0.4994258
        %v671 = vmul.f32 %v651, %v670
        %v672 = vadd.f32 %v671, 1.0
        %v673 = vrcp.pop %v672
        %v674 = vmul.f32 %v672, %v673
        %v675 = vsub.f32 1.0, %v674
        %v676 = vmul.f32 %v673, %v675
        %v677 = vadd.f32 %v673, %v676
        %vm678 = vweird.f32 %v672
        %vm679 = vweird.f32 %v673
        %vm680 = vmor %vm678, %vm679
        %v681 = vsel %vm680, %v673, %v677
        %v682 = vand.u32 2147483647, %v672
        %vm683 = vcmp.eq.f32.partialorder %v682, 8.507059e+37
        %v684 = vand.u32 %v672, 2147483648
        %v685 = vor.u32 1.1754944e-38, %v684
        %v686 = vsel %vm683, %v685, %v681
        %v687 = vmul.f32 %v662, %v686
        %v688 = vmin.f32 %v687, 1.0
        %v689 = vmax.f32 %v688, -1.0
        %v690 = vadd.f32 %v409, 1.0
        %v691 = vadd.f32 %v449, 1.0
        %v692 = vadd.f32 %v489, 1.0
        %v693 = vadd.f32 %v529, 1.0
        %v694 = vadd.f32 %v569, 1.0
        %v695 = vadd.f32 %v609, 1.0
        %v696 = vadd.f32 %v649, 1.0
        %v697 = vadd.f32 %v689, 1.0
        %v698 = vmul.f32 %v354, %v690
        %v699 = vmul.f32 %v355, %v691
        %v700 = vmul.f32 %v356, %v692
        %v701 = vmul.f32 %v357, %v693
        %v702 = vmul.f32 %v358, %v694
        %v703 = vmul.f32 %v359, %v695
        %v704 = vmul.f32 %v360, %v696
        %v705 = vmul.f32 %v361, %v697
        %v706 = vld [vmem:[%s3] sm:$0xff]
        %v707 = vld [vmem:[%s3 + $0x8] sm:$0xff]
        %v708 = vld [vmem:[%s4] sm:$0xff]
        %v709 = vld [vmem:[%s4 + $0x8] sm:$0xff]
        %711 = vset.pattern.permute.xlu0 0
        %712 = vperm.xlu0 %711, %v708
        %v713 = vpop.permute.xlu0 %712
        %716 = vset.pattern.permute.xlu0 0
        %717 = vperm.xlu0 %716, %v709
        %v718 = vpop.permute.xlu0 %717
        %v721 = vsel %vm283, %v706, 0
        %v724 = vsel %vm283, %v707, 0
        %726 = vmatpush.msra.mxu0 0.0
        %727 = vmatpush.msra.mxu0 0.0
        %728 = vmatpush.msra.mxu0 0.0
        %729 = vmatpush.msra.mxu0 0.0
        %730 = vmatpush.msra.mxu0 0.0
        %731 = vmatpush.msra.mxu0 0.0
        %732 = vmatpush.msra.mxu0 0.0
        %733 = vmatpush.msra.mxu0 0.0
        %734 = vmatpush.msra.mxu0 0.0
        %735 = vmatpush.msra.mxu0 0.0
        %736 = vmatpush.msra.mxu0 0.0
        %737 = vmatpush.msra.mxu0 0.0
        %738 = vmatpush.msra.mxu0 %v704
        %739 = vmatpush.msra.mxu0 %v702
        %740 = vmatpush.msra.mxu0 %v700
        %741 = vmatpush.msra.mxu0 %v698
        %742 = vmatmul.f32.gmra.mxu0 %v721
        %v743 = vpop.f32.mrf.mxu0
        %v744 = vadd.f32 %v713, %v743
        %745 = vmatmul.f32.gmra.mxu0 %v724
        %v746 = vpop.f32.mrf.mxu0
        %v747 = vadd.f32 %v718, %v746
        %748 = vdwg.mxu0
        %749 = vmatpush.msra.mxu0 0.0
        %750 = vmatpush.msra.mxu0 0.0
        %751 = vmatpush.msra.mxu0 0.0
        %752 = vmatpush.msra.mxu0 0.0
        %753 = vmatpush.msra.mxu0 0.0
        %754 = vmatpush.msra.mxu0 0.0
        %755 = vmatpush.msra.mxu0 0.0
        %756 = vmatpush.msra.mxu0 0.0
        %757 = vmatpush.msra.mxu0 0.0
        %758 = vmatpush.msra.mxu0 0.0
        %759 = vmatpush.msra.mxu0 0.0
        %760 = vmatpush.msra.mxu0 0.0
        %761 = vmatpush.msra.mxu0 %v705
        %762 = vmatpush.msra.mxu0 %v703
        %763 = vmatpush.msra.mxu0 %v701
        %764 = vmatpush.msra.mxu0 %v699
        %765 = vmatmul.f32.gmra.mxu0 %v721
        %v766 = vpop.f32.mrf.mxu0
        %v767 = vadd.f32 %v713, %v766
        %768 = vmatmul.f32.gmra.mxu0 %v724
        %v769 = vpop.f32.mrf.mxu0
        %v770 = vadd.f32 %v718, %v769
        %771 = vdwg.mxu0
        %772 = vst [vmem:[%s244] sm:$0xff] %v744
        %773 = vst [vmem:[%s244 + $0x8] sm:$0xff] %v767
        %774 = vst [vmem:[%s244 + $0x10] sm:$0xff] %v747
        %775 = vst [vmem:[%s244 + $0x18] sm:$0xff] %v770
        %s776 = sand.u32 %s140, 1
        %s777 = scalar_lea.sflag [#allocation4], %s776
        %s778 = sand.u32 %s140, 1
        %s779 = smul.addr %s778, 32
        %s780 = scalar_lea.vmem [#allocation5], %s779
        // Predicated region
        $region45: #{tpu_custom_call.1} parent=39 // pred_check
          %p781 = pneg %p150
        $region46: #{tpu_custom_call.1} parent=39 // pred_check_branch
          %783 = sbr.rel (%p781) target = $region48
        $region47: #{tpu_custom_call.1} parent=39 // pred_region
          %s784 = smul.u32 2, %s22
          %786 = vsyncadd %s777, 0
          %s787 = smul.addr %s784, 8
          %s788 = scalar_lea.hbm %s5, %s787
          %s789 = sshll.u32 %s780, 4
          %s790 = int_to_ptr.vmem [resolvable:$true] %s789
          %s791 = sshll.u32 %s788, 4
          %s792 = int_to_ptr.hbm [resolvable:$true] %s791
          %797 = dma.vmem_to_hbm [thread:$0]  %s790, 512, %s792, %s777, 256, 512, 16
        $region48: #{tpu_custom_call.1} parent=39 // pred_fallthru
          _
      $region40: #{tpu_custom_call.1} parent=5 // pred_fallthru
        _
      %p798 = scmp.le.s32.totalorder 2, %s17
      // Predicated region
      $region49: #{tpu_custom_call.1} parent=5 // pred_check
        %p799 = pneg %p798
      $region50: #{tpu_custom_call.1} parent=5 // pred_check_branch
        %801 = sbr.rel (%p799) target = $region52
      $region51: #{tpu_custom_call.1} parent=5 // pred_region
        %s802 = ssub.s32 %s17, 2
        // Predicated region
        $region53: #{tpu_custom_call.1} parent=51 // pred_check
          %p803 = pneg %p156
        $region54: #{tpu_custom_call.1} parent=51 // pred_check_branch
          %805 = sbr.rel (%p803) target = $region56
        $region55: #{tpu_custom_call.1} parent=51 // pred_region
          %s806 = sand.u32 %s141, 1
          %s807 = scalar_lea.sflag [#allocation4], %s806
          %s808 = sand.u32 %s141, 1
          %s809 = smul.addr %s808, 32
          %s810 = scalar_lea.vmem [#allocation5], %s809
          %812 = dma.done %s807, 512
        $region56: #{tpu_custom_call.1} parent=51 // pred_fallthru
          _
      $region52: #{tpu_custom_call.1} parent=5 // pred_fallthru
        _
    $region6: #{tpu_custom_call.1} parent=1 // loop_footer
      %s21 = sadd.s32 1, %s17
    $region7: #{tpu_custom_call.1} parent=1 // loop_footer_branch
      %16 = sbr.rel target = $region3
    $region8: #{tpu_custom_call.1} parent=1 // loop_exit
      _
    %813 = vsyncpa [#allocation3], 1
    %s814 = scalar_lea.sflag [#allocation3], 1
    %815 = vsyncpa %s814, 1
    %816 = vsyncpa [#allocation4], 1
    %s817 = scalar_lea.sflag [#allocation4], 1
    %818 = vsyncpa %s817, 1

// kernel: tpu_custom_call.1
$region0: #{tpu_custom_call.1}
  #allocation0 [shape = 'u32[]', space=smem, size = 0x4, offset = 0x4, fixed_abs, tag = 'smem constant byte address 0x4 - core index']
  #allocation1 [shape = 'u32[72,128]{1,0:T(1,128)}', space=vmem, size = 0x9000, scoped, tag = 'internal scratch']
  %s0 = inlined_call_operand.hbm [shape: f32[32,512], index: 0, kind: input, shape index: {}]
  %s1 = inlined_call_operand.vmem [shape: f32[32,32], index: 1, kind: input, shape index: {}]
  %s2 = inlined_call_operand.vmem [shape: f32[32,1], index: 2, kind: input, shape index: {}]
  %s3 = inlined_call_operand.vmem [shape: f32[16,32], index: 3, kind: input, shape index: {}]
  %s4 = inlined_call_operand.vmem [shape: f32[16,1], index: 4, kind: input, shape index: {}]
  %s5 = inlined_call_operand.hbm [shape: f32[16,512], index: 5, kind: output, shape index: {}]
  %s6 = sld [smem:[#allocation0]]
  $region57: #{tpu_custom_call.1} parent=0
    _
  %s8 = ssub.s32 1, %s6
  %s9 = scalar_select 0, %s8, %s6
  $region1: #{tpu_custom_call.1} parent=0
    #allocation2 [shape = 'u8[65536]{0}', space=vmem, size = 0x10000, scoped, tag = 'input window, operand 0']
    #allocation3 [shape = 's32[2]{0}', space=sflag, size = 0x8, scoped, tag = 'scoped memory for tpu_custom_call.1']
    #allocation4 [shape = 's32[2]{0}', space=sflag, size = 0x8, scoped, tag = 'scoped memory for tpu_custom_call.1']
    #allocation5 [shape = 'u8[32768]{0}', space=vmem, size = 0x8000, scoped, tag = 'output window, operand 0']
    %10 = vsyncpa [#allocation3], 0
    %s11 = scalar_lea.sflag [#allocation3], 1
    %12 = vsyncpa %s11, 0
    %13 = vsyncpa [#allocation4], 0
    %s14 = scalar_lea.sflag [#allocation4], 1
    %15 = vsyncpa %s14, 0
    loop: start=0, step=1, limit=4
    $region2: #{tpu_custom_call.1} parent=1 // loop_pre_header
      _
    $region3: #{tpu_custom_call.1} parent=1 // loop_header
      %s17 = sphi 0, %s21
      %p18 = scmp.ge.s32.totalorder %s17, 4
      %s27 = sphi 0, %s29
      %s30 = sphi 0, %s27
      %s31 = sphi 0, %s30
      %s47 = sphi 0, %s31
      %s51 = sphi 0, %s51
      %s53 = sphi 0, %s51
      %s54 = sphi 0, %s53
      %s68 = sphi 0, %s54
      %s72 = sphi 0, %s72
      %s74 = sphi 0, %s72
      %s75 = sphi 0, %s74
      %s89 = sphi 0, %s75
      %s93 = sphi 0, %s93
      %s95 = sphi 0, %s93
      %s96 = sphi 0, %s95
      %s110 = sphi 0, %s96
      %s114 = sphi 0, %s114
      %s116 = sphi 0, %s114
      %s117 = sphi 0, %s116
      %s131 = sphi 0, %s117
      %s137 = sphi 0, %s139
      %s140 = sphi 0, %s137
      %s141 = sphi 0, %s140
      %s157 = sphi 0, %s141
    $region4: #{tpu_custom_call.1} parent=1 // loop_header_branch
      %20 = sbr.rel (%p18) target = $region8
    $region5: #{tpu_custom_call.1} parent=1 // loop_body
      %s22 = ssub.s32 %s17, 1
      %s23 = ssub.s32 %s17, 2
      %s24 = sadd.s32 %s17, 1
      %s25 = ssub.s32 %s17, %s24
      %p26 = scmp.eq.s32.totalorder %s25, 0
      %s28 = sadd.s32 %s27, 1
      %s29 = scalar_select %p26, %s27, %s28
      %p32 = pneg %p26
      %p33 = scmp.eq.s32.totalorder %s17, 1
      %p34 = por %p32, %p33
      %p35 = scmp.ne.s32.totalorder %s27, %s30
      %p36 = scmp.eq.s32.totalorder %s17, 0
      %p37 = por %p35, %p36
      %p38 = scmp.ne.s32.totalorder %s27, %s30
      %p39 = scmp.eq.s32.totalorder %s22, 1
      %p40 = por %p38, %p39
      %p41 = scmp.ne.s32.totalorder %s30, %s31
      %p42 = scmp.eq.s32.totalorder %s22, 0
      %p43 = por %p41, %p42
      %p44 = scmp.ne.s32.totalorder %s30, %s31
      %p45 = scmp.eq.s32.totalorder %s23, 1
      %p46 = por %p44, %p45
      %p48 = scmp.ne.s32.totalorder %s31, %s47
      %p49 = scmp.eq.s32.totalorder %s23, 0
      %p50 = por %p48, %p49
      %s52 = sadd.s32 %s51, 1
      %p55 = scmp.eq.s32.totalorder %s17, 1
      %p56 = scmp.ne.s32.totalorder %s51, %s53
      %p57 = scmp.eq.s32.totalorder %s17, 0
      %p58 = por %p56, %p57
      %p59 = scmp.ne.s32.totalorder %s51, %s53
      %p60 = scmp.eq.s32.totalorder %s22, 1
      %p61 = por %p59, %p60
      %p62 = scmp.ne.s32.totalorder %s53, %s54
      %p63 = scmp.eq.s32.totalorder %s22, 0
      %p64 = por %p62, %p63
      %p65 = scmp.ne.s32.totalorder %s53, %s54
      %p66 = scmp.eq.s32.totalorder %s23, 1
      %p67 = por %p65, %p66
      %p69 = scmp.ne.s32.totalorder %s54, %s68
      %p70 = scmp.eq.s32.totalorder %s23, 0
      %p71 = por %p69, %p70
      %s73 = sadd.s32 %s72, 1
      %p76 = scmp.eq.s32.totalorder %s17, 1
      %p77 = scmp.ne.s32.totalorder %s72, %s74
      %p78 = scmp.eq.s32.totalorder %s17, 0
      %p79 = por %p77, %p78
      %p80 = scmp.ne.s32.totalorder %s72, %s74
      %p81 = scmp.eq.s32.totalorder %s22, 1
      %p82 = por %p80, %p81
      %p83 = scmp.ne.s32.totalorder %s74, %s75
      %p84 = scmp.eq.s32.totalorder %s22, 0
      %p85 = por %p83, %p84
      %p86 = scmp.ne.s32.totalorder %s74, %s75
      %p87 = scmp.eq.s32.totalorder %s23, 1
      %p88 = por %p86, %p87
      %p90 = scmp.ne.s32.totalorder %s75, %s89
      %p91 = scmp.eq.s32.totalorder %s23, 0
      %p92 = por %p90, %p91
      %s94 = sadd.s32 %s93, 1
      %p97 = scmp.eq.s32.totalorder %s17, 1
      %p98 = scmp.ne.s32.totalorder %s93, %s95
      %p99 = scmp.eq.s32.totalorder %s17, 0
      %p100 = por %p98, %p99
      %p101 = scmp.ne.s32.totalorder %s93, %s95
      %p102 = scmp.eq.s32.totalorder %s22, 1
      %p103 = por %p101, %p102
      %p104 = scmp.ne.s32.totalorder %s95, %s96
      %p105 = scmp.eq.s32.totalorder %s22, 0
      %p106 = por %p104, %p105
      %p107 = scmp.ne.s32.totalorder %s95, %s96
      %p108 = scmp.eq.s32.totalorder %s23, 1
      %p109 = por %p107, %p108
      %p111 = scmp.ne.s32.totalorder %s96, %s110
      %p112 = scmp.eq.s32.totalorder %s23, 0
      %p113 = por %p111, %p112
      %s115 = sadd.s32 %s114, 1
      %p118 = scmp.eq.s32.totalorder %s17, 1
      %p119 = scmp.ne.s32.totalorder %s114, %s116
      %p120 = scmp.eq.s32.totalorder %s17, 0
      %p121 = por %p119, %p120
      %p122 = scmp.ne.s32.totalorder %s114, %s116
      %p123 = scmp.eq.s32.totalorder %s22, 1
      %p124 = por %p122, %p123
      %p125 = scmp.ne.s32.totalorder %s116, %s117
      %p126 = scmp.eq.s32.totalorder %s22, 0
      %p127 = por %p125, %p126
      %p128 = scmp.ne.s32.totalorder %s116, %s117
      %p129 = scmp.eq.s32.totalorder %s23, 1
      %p130 = por %p128, %p129
      %p132 = scmp.ne.s32.totalorder %s117, %s131
      %p133 = scmp.eq.s32.totalorder %s23, 0
      %p134 = por %p132, %p133
      %s135 = ssub.s32 %s17, %s24
      %p136 = scmp.eq.s32.totalorder %s135, 0
      %s138 = sadd.s32 %s137, 1
      %s139 = scalar_select %p136, %s137, %s138
      %p142 = pneg %p136
      %p143 = scmp.eq.s32.totalorder %s17, 1
      %p144 = por %p142, %p143
      %p145 = scmp.ne.s32.totalorder %s137, %s140
      %p146 = scmp.eq.s32.totalorder %s17, 0
      %p147 = por %p145, %p146
      %p148 = scmp.ne.s32.totalorder %s137, %s140
      %p149 = scmp.eq.s32.totalorder %s22, 1
      %p150 = por %p148, %p149
      %p151 = scmp.ne.s32.totalorder %s140, %s141
      %p152 = scmp.eq.s32.totalorder %s22, 0
      %p153 = por %p151, %p152
      %p154 = scmp.ne.s32.totalorder %s140, %s141
      %p155 = scmp.eq.s32.totalorder %s23, 1
      %p156 = por %p154, %p155
      %p158 = scmp.ne.s32.totalorder %s141, %s157
      %p159 = scmp.eq.s32.totalorder %s23, 0
      %p160 = por %p158, %p159
      %p161 = scmp.le.s32.totalorder 1, %s17
      %p162 = scmp.lt.s32.totalorder %s17, 3
      %p163 = pnand %p161, %p162
      %p164 = pneg %p163
      // Predicated region
      $region9: #{tpu_custom_call.1} parent=5 // pred_check
        _
      $region10: #{tpu_custom_call.1} parent=5 // pred_check_branch
        %166 = sbr.rel (%p163) target = $region12
      $region11: #{tpu_custom_call.1} parent=5 // pred_region
        %s167 = ssub.s32 %s17, 1
        // Predicated region
        $region13: #{tpu_custom_call.1} parent=11 // pred_check
          %p168 = pneg %p64
        $region14: #{tpu_custom_call.1} parent=11 // pred_check_branch
          %170 = sbr.rel (%p168) target = $region16
        $region15: #{tpu_custom_call.1} parent=11 // pred_region
          _
        $region16: #{tpu_custom_call.1} parent=11 // pred_fallthru
          _
        // Predicated region
        $region17: #{tpu_custom_call.1} parent=11 // pred_check
          %p171 = pneg %p85
        $region18: #{tpu_custom_call.1} parent=11 // pred_check_branch
          %173 = sbr.rel (%p171) target = $region20
        $region19: #{tpu_custom_call.1} parent=11 // pred_region
          _
        $region20: #{tpu_custom_call.1} parent=11 // pred_fallthru
          _
        // Predicated region
        $region21: #{tpu_custom_call.1} parent=11 // pred_check
          %p174 = pneg %p106
        $region22: #{tpu_custom_call.1} parent=11 // pred_check_branch
          %176 = sbr.rel (%p174) target = $region24
        $region23: #{tpu_custom_call.1} parent=11 // pred_region
          _
        $region24: #{tpu_custom_call.1} parent=11 // pred_fallthru
          _
        // Predicated region
        $region25: #{tpu_custom_call.1} parent=11 // pred_check
          %p177 = pneg %p127
        $region26: #{tpu_custom_call.1} parent=11 // pred_check_branch
          %179 = sbr.rel (%p177) target = $region28
        $region27: #{tpu_custom_call.1} parent=11 // pred_region
          _
        $region28: #{tpu_custom_call.1} parent=11 // pred_fallthru
          _
      $region12: #{tpu_custom_call.1} parent=5 // pred_fallthru
        _
      %p180 = scmp.lt.s32.totalorder %s17, 2
      // Predicated region
      $region29: #{tpu_custom_call.1} parent=5 // pred_check
        %p181 = pneg %p180
      $region30: #{tpu_custom_call.1} parent=5 // pred_check_branch
        %183 = sbr.rel (%p181) target = $region32
      $region31: #{tpu_custom_call.1} parent=5 // pred_region
        // Predicated region
        $region33: #{tpu_custom_call.1} parent=31 // pred_check
          %p184 = pneg %p37
        $region34: #{tpu_custom_call.1} parent=31 // pred_check_branch
          %186 = sbr.rel (%p184) target = $region36
        $region35: #{tpu_custom_call.1} parent=31 // pred_region
          %s187 = sand.u32 %s27, 1
          %s188 = scalar_lea.sflag [#allocation3], %s187
          %s189 = sand.u32 %s27, 1
          %s190 = smul.addr %s189, 64
          %s191 = scalar_lea.vmem [#allocation2], %s190
          %s192 = smul.u32 2, %s17
          %194 = vsyncadd %s188, 0
          %s195 = smul.addr %s192, 8
          %s196 = scalar_lea.hbm %s0, %s195
          %s197 = sshll.u32 %s196, 4
          %s198 = int_to_ptr.hbm [resolvable:$true] %s197
          %s199 = sshll.u32 %s191, 4
          %s200 = int_to_ptr.vmem [resolvable:$true] %s199
          %205 = dma.hbm_to_vmem [thread:$0]  %s198, 1024, %s200, %s188, 512, 256, 16
        $region36: #{tpu_custom_call.1} parent=31 // pred_fallthru
          _
      $region32: #{tpu_custom_call.1} parent=5 // pred_fallthru
        _
      %p206 = scmp.le.s32.totalorder 1, %s17
      %p207 = scmp.lt.s32.totalorder %s17, 3
      %p208 = pnand %p206, %p207
      %p209 = pneg %p208
      // Predicated region
      $region37: #{tpu_custom_call.1} parent=5 // pred_check
        _
      $region38: #{tpu_custom_call.1} parent=5 // pred_check_branch
        %211 = sbr.rel (%p208) target = $region40
      $region39: #{tpu_custom_call.1} parent=5 // pred_region
        %s212 = ssub.s32 %s17, 1
        %s213 = sand.u32 %s30, 1
        %s214 = scalar_lea.sflag [#allocation3], %s213
        %s215 = sand.u32 %s30, 1
        %s216 = smul.addr %s215, 64
        %s217 = scalar_lea.vmem [#allocation2], %s216
        // Predicated region
        $region41: #{tpu_custom_call.1} parent=39 // pred_check
          %p218 = pneg %p43
        $region42: #{tpu_custom_call.1} parent=39 // pred_check_branch
          %220 = sbr.rel (%p218) target = $region44
        $region43: #{tpu_custom_call.1} parent=39 // pred_region
          %222 = dma.done %s214, 1024
        $region44: #{tpu_custom_call.1} parent=39 // pred_fallthru
          _
        %s223 = sand.u32 %s30, 1
        %s224 = scalar_lea.sflag [#allocation3], %s223
        %s225 = sand.u32 %s30, 1
        %s226 = smul.addr %s225, 64
        %s227 = scalar_lea.vmem [#allocation2], %s226
        %p228 = pneg %p43
        %p229 = pneg %p40
        %p230 = pneg %p64
        %p231 = pneg %p61
        %p232 = pneg %p85
        %p233 = pneg %p82
        %p234 = pneg %p106
        %p235 = pneg %p103
        %p236 = pneg %p127
        %p237 = pneg %p124
        %p238 = pneg %p153
        %p239 = pneg %p150
        %s240 = sand.u32 %s140, 1
        %s241 = scalar_lea.sflag [#allocation4], %s240
        %s242 = sand.u32 %s140, 1
        %s243 = smul.addr %s242, 32
        %s244 = scalar_lea.vmem [#allocation5], %s243
        %s245 = smul.u32 2, %s22
        %s246 = smul.u32 2, %s22
        %v247 = vld [vmem:[%s1] sm:$0xff]
        %v248 = vld [vmem:[%s1 + $0x8] sm:$0xff]
        %v249 = vld [vmem:[%s1 + $0x10] sm:$0xff]
        %v250 = vld [vmem:[%s1 + $0x18] sm:$0xff]
        %v251 = vld [vmem:[%s217] sm:$0xff]
        %v252 = vld [vmem:[%s217 + $0x8] sm:$0xff]
        %v253 = vld [vmem:[%s217 + $0x10] sm:$0xff]
        %v254 = vld [vmem:[%s217 + $0x18] sm:$0xff]
        %v255 = vld [vmem:[%s217 + $0x20] sm:$0xff]
        %v256 = vld [vmem:[%s217 + $0x28] sm:$0xff]
        %v257 = vld [vmem:[%s217 + $0x30] sm:$0xff]
        %v258 = vld [vmem:[%s217 + $0x38] sm:$0xff]
        %v259 = vld [vmem:[%s2] sm:$0xff]
        %v260 = vld [vmem:[%s2 + $0x8] sm:$0xff]
        %v261 = vld [vmem:[%s2 + $0x10] sm:$0xff]
        %v262 = vld [vmem:[%s2 + $0x18] sm:$0xff]
        %264 = vset.pattern.permute.xlu0 0
        %265 = vperm.xlu0 %264, %v259
        %v266 = vpop.permute.xlu0 %265
        %269 = vset.pattern.permute.xlu0 0
        %270 = vperm.xlu0 %269, %v260
        %v271 = vpop.permute.xlu0 %270
        %274 = vset.pattern.permute.xlu0 0
        %275 = vperm.xlu0 %274, %v261
        %v276 = vpop.permute.xlu0 %275
        %279 = vset.pattern.permute.xlu0 0
        %280 = vperm.xlu0 %279, %v262
        %v281 = vpop.permute.xlu0 %280
        %vm283 = vcmask 261120
        %v285 = vsel %vm283, %v247, 0
        %v288 = vsel %vm283, %v248, 0
        %v291 = vsel %vm283, %v249, 0
        %v294 = vsel %vm283, %v250, 0
        %296 = vmatpush.msra.mxu0 0.0
        %297 = vmatpush.msra.mxu0 0.0
        %298 = vmatpush.msra.mxu0 0.0
        %299 = vmatpush.msra.mxu0 0.0
        %300 = vmatpush.msra.mxu0 0.0
        %301 = vmatpush.msra.mxu0 0.0
        %302 = vmatpush.msra.mxu0 0.0
        %303 = vmatpush.msra.mxu0 0.0
        %304 = vmatpush.msra.mxu0 0.0
        %305 = vmatpush.msra.mxu0 0.0
        %306 = vmatpush.msra.mxu0 0.0
        %307 = vmatpush.msra.mxu0 0.0
        %308 = vmatpush.msra.mxu0 %v257
        %309 = vmatpush.msra.mxu0 %v255
        %310 = vmatpush.msra.mxu0 %v253
        %311 = vmatpush.msra.mxu0 %v251
        %312 = vmatmul.f32.gmra.mxu0 %v285
        %v313 = vpop.f32.mrf.mxu0
        %v314 = vadd.f32 %v266, %v313
        %315 = vmatmul.f32.gmra.mxu0 %v288
        %v316 = vpop.f32.mrf.mxu0
        %v317 = vadd.f32 %v271, %v316
        %318 = vmatmul.f32.gmra.mxu0 %v291
        %v319 = vpop.f32.mrf.mxu0
        %v320 = vadd.f32 %v276, %v319
        %321 = vmatmul.f32.gmra.mxu0 %v294
        %v322 = vpop.f32.mrf.mxu0
        %v323 = vadd.f32 %v281, %v322
        %324 = vdwg.mxu0
        %325 = vmatpush.msra.mxu0 0.0
        %326 = vmatpush.msra.mxu0 0.0
        %327 = vmatpush.msra.mxu0 0.0
        %328 = vmatpush.msra.mxu0 0.0
        %329 = vmatpush.msra.mxu0 0.0
        %330 = vmatpush.msra.mxu0 0.0
        %331 = vmatpush.msra.mxu0 0.0
        %332 = vmatpush.msra.mxu0 0.0
        %333 = vmatpush.msra.mxu0 0.0
        %334 = vmatpush.msra.mxu0 0.0
        %335 = vmatpush.msra.mxu0 0.0
        %336 = vmatpush.msra.mxu0 0.0
        %337 = vmatpush.msra.mxu0 %v258
        %338 = vmatpush.msra.mxu0 %v256
        %339 = vmatpush.msra.mxu0 %v254
        %340 = vmatpush.msra.mxu0 %v252
        %341 = vmatmul.f32.gmra.mxu0 %v285
        %v342 = vpop.f32.mrf.mxu0
        %v343 = vadd.f32 %v266, %v342
        %344 = vmatmul.f32.gmra.mxu0 %v288
        %v345 = vpop.f32.mrf.mxu0
        %v346 = vadd.f32 %v271, %v345
        %347 = vmatmul.f32.gmra.mxu0 %v291
        %v348 = vpop.f32.mrf.mxu0
        %v349 = vadd.f32 %v276, %v348
        %350 = vmatmul.f32.gmra.mxu0 %v294
        %v351 = vpop.f32.mrf.mxu0
        %v352 = vadd.f32 %v281, %v351
        %353 = vdwg.mxu0
        %v354 = vmul.f32 %v314, 0.5
        %v355 = vmul.f32 %v343, 0.5
        %v356 = vmul.f32 %v317, 0.5
        %v357 = vmul.f32 %v346, 0.5
        %v358 = vmul.f32 %v320, 0.5
        %v359 = vmul.f32 %v349, 0.5
        %v360 = vmul.f32 %v323, 0.5
        %v361 = vmul.f32 %v352, 0.5
        %v362 = vmul.f32 %v314, 0.70710677
        %v363 = vmul.f32 %v343, 0.70710677
        %v364 = vmul.f32 %v317, 0.70710677
        %v365 = vmul.f32 %v346, 0.70710677
        %v366 = vmul.f32 %v320, 0.70710677
        %v367 = vmul.f32 %v349, 0.70710677
        %v368 = vmul.f32 %v323, 0.70710677
        %v369 = vmul.f32 %v352, 0.70710677
        %v370 = vmul.f32 %v362, %v362
        %v371 = vmin.f32 16.0, %v370
        %v372 = vmul.f32 %v371, 2.1237322e-06
        %v373 = vadd.f32 %v372, 0.00028619796
        %v374 = vmul.f32 %v371, %v373
        %v375 = vadd.f32 %v374, 0.0036580483
        %v376 = vmul.f32 %v371, %v375
        %v377 = vadd.f32 %v376, 0.05243302
        %v378 = vmul.f32 %v371, %v377
        %v379 = vadd.f32 %v378, 0.18741608
        %v380 = vmul.f32 %v371, %v379
        %v381 = vadd.f32 %v380, 1.1283791
        %v382 = vmul.f32 %v362, %v381
        %v383 = vmul.f32 %v371, 3.8918573e-05
        %v384 = vadd.f32 %v383, 0.001143296
        %v385 = vmul.f32 %v371, %v384
        %v386 = vadd.f32 %v385, 0.014752088
        %v387 = vmul.f32 %v371, %v386
        %v388 = vadd.f32 %v387, 0.112945676
        %v389 = vmul.f32 %v371, %v388
        %v390 = vadd.f32 %v389, 0.4994258
        %v391 = vmul.f32 %v371, %v390
        %v392 = vadd.f32 %v391, 1.0
        %v393 = vrcp.pop %v392
        %v394 = vmul.f32 %v392, %v393
        %v395 = vsub.f32 1.0, %v394
        %v396 = vmul.f32 %v393, %v395
        %v397 = vadd.f32 %v393, %v396
        %vm398 = vweird.f32 %v392
        %vm399 = vweird.f32 %v393
        %vm400 = vmor %vm398, %vm399
        %v401 = vsel %vm400, %v393, %v397
        %v402 = vand.u32 2147483647, %v392
        %vm403 = vcmp.eq.f32.partialorder %v402, 8.507059e+37
        %v404 = vand.u32 %v392, 2147483648
        %v405 = vor.u32 1.1754944e-38, %v404
        %v406 = vsel %vm403, %v405, %v401
        %v407 = vmul.f32 %v382, %v406
        %v408 = vmin.f32 %v407, 1.0
        %v409 = vmax.f32 %v408, -1.0
        %v410 = vmul.f32 %v363, %v363
        %v411 = vmin.f32 16.0, %v410
        %v412 = vmul.f32 %v411, 2.1237322e-06
        %v413 = vadd.f32 %v412, 0.00028619796
        %v414 = vmul.f32 %v411, %v413
        %v415 = vadd.f32 %v414, 0.0036580483
        %v416 = vmul.f32 %v411, %v415
        %v417 = vadd.f32 %v416, 0.05243302
        %v418 = vmul.f32 %v411, %v417
        %v419 = vadd.f32 %v418, 0.18741608
        %v420 = vmul.f32 %v411, %v419
        %v421 = vadd.f32 %v420, 1.1283791
        %v422 = vmul.f32 %v363, %v421
        %v423 = vmul.f32 %v411, 3.8918573e-05
        %v424 = vadd.f32 %v423, 0.001143296
        %v425 = vmul.f32 %v411, %v424
        %v426 = vadd.f32 %v425, 0.014752088
        %v427 = vmul.f32 %v411, %v426
        %v428 = vadd.f32 %v427, 0.112945676
        %v429 = vmul.f32 %v411, %v428
        %v430 = vadd.f32 %v429, 0.4994258
        %v431 = vmul.f32 %v411, %v430
        %v432 = vadd.f32 %v431, 1.0
        %v433 = vrcp.pop %v432
        %v434 = vmul.f32 %v432, %v433
        %v435 = vsub.f32 1.0, %v434
        %v436 = vmul.f32 %v433, %v435
        %v437 = vadd.f32 %v433, %v436
        %vm438 = vweird.f32 %v432
        %vm439 = vweird.f32 %v433
        %vm440 = vmor %vm438, %vm439
        %v441 = vsel %vm440, %v433, %v437
        %v442 = vand.u32 2147483647, %v432
        %vm443 = vcmp.eq.f32.partialorder %v442, 8.507059e+37
        %v444 = vand.u32 %v432, 2147483648
        %v445 = vor.u32 1.1754944e-38, %v444
        %v446 = vsel %vm443, %v445, %v441
        %v447 = vmul.f32 %v422, %v446
        %v448 = vmin.f32 %v447, 1.0
        %v449 = vmax.f32 %v448, -1.0
        %v450 = vmul.f32 %v364, %v364
        %v451 = vmin.f32 16.0, %v450
        %v452 = vmul.f32 %v451, 2.1237322e-06
        %v453 = vadd.f32 %v452, 0.00028619796
        %v454 = vmul.f32 %v451, %v453
        %v455 = vadd.f32 %v454, 0.0036580483
        %v456 = vmul.f32 %v451, %v455
        %v457 = vadd.f32 %v456, 0.05243302
        %v458 = vmul.f32 %v451, %v457
        %v459 = vadd.f32 %v458, 0.18741608
        %v460 = vmul.f32 %v451, %v459
        %v461 = vadd.f32 %v460, 1.1283791
        %v462 = vmul.f32 %v364, %v461
        %v463 = vmul.f32 %v451, 3.8918573e-05
        %v464 = vadd.f32 %v463, 0.001143296
        %v465 = vmul.f32 %v451, %v464
        %v466 = vadd.f32 %v465, 0.014752088
        %v467 = vmul.f32 %v451, %v466
        %v468 = vadd.f32 %v467, 0.112945676
        %v469 = vmul.f32 %v451, %v468
        %v470 = vadd.f32 %v469, 0.4994258
        %v471 = vmul.f32 %v451, %v470
        %v472 = vadd.f32 %v471, 1.0
        %v473 = vrcp.pop %v472
        %v474 = vmul.f32 %v472, %v473
        %v475 = vsub.f32 1.0, %v474
        %v476 = vmul.f32 %v473, %v475
        %v477 = vadd.f32 %v473, %v476
        %vm478 = vweird.f32 %v472
        %vm479 = vweird.f32 %v473
        %vm480 = vmor %vm478, %vm479
        %v481 = vsel %vm480, %v473, %v477
        %v482 = vand.u32 2147483647, %v472
        %vm483 = vcmp.eq.f32.partialorder %v482, 8.507059e+37
        %v484 = vand.u32 %v472, 2147483648
        %v485 = vor.u32 1.1754944e-38, %v484
        %v486 = vsel %vm483, %v485, %v481
        %v487 = vmul.f32 %v462, %v486
        %v488 = vmin.f32 %v487, 1.0
        %v489 = vmax.f32 %v488, -1.0
        %v490 = vmul.f32 %v365, %v365
        %v491 = vmin.f32 16.0, %v490
        %v492 = vmul.f32 %v491, 2.1237322e-06
        %v493 = vadd.f32 %v492, 0.00028619796
        %v494 = vmul.f32 %v491, %v493
        %v495 = vadd.f32 %v494, 0.0036580483
        %v496 = vmul.f32 %v491, %v495
        %v497 = vadd.f32 %v496, 0.05243302
        %v498 = vmul.f32 %v491, %v497
        %v499 = vadd.f32 %v498, 0.18741608
        %v500 = vmul.f32 %v491, %v499
        %v501 = vadd.f32 %v500, 1.1283791
        %v502 = vmul.f32 %v365, %v501
        %v503 = vmul.f32 %v491, 3.8918573e-05
        %v504 = vadd.f32 %v503, 0.001143296
        %v505 = vmul.f32 %v491, %v504
        %v506 = vadd.f32 %v505, 0.014752088
        %v507 = vmul.f32 %v491, %v506
        %v508 = vadd.f32 %v507, 0.112945676
        %v509 = vmul.f32 %v491, %v508
        %v510 = vadd.f32 %v509, 0.4994258
        %v511 = vmul.f32 %v491, %v510
        %v512 = vadd.f32 %v511, 1.0
        %v513 = vrcp.pop %v512
        %v514 = vmul.f32 %v512, %v513
        %v515 = vsub.f32 1.0, %v514
        %v516 = vmul.f32 %v513, %v515
        %v517 = vadd.f32 %v513, %v516
        %vm518 = vweird.f32 %v512
        %vm519 = vweird.f32 %v513
        %vm520 = vmor %vm518, %vm519
        %v521 = vsel %vm520, %v513, %v517
        %v522 = vand.u32 2147483647, %v512
        %vm523 = vcmp.eq.f32.partialorder %v522, 8.507059e+37
        %v524 = vand.u32 %v512, 2147483648
        %v525 = vor.u32 1.1754944e-38, %v524
        %v526 = vsel %vm523, %v525, %v521
        %v527 = vmul.f32 %v502, %v526
        %v528 = vmin.f32 %v527, 1.0
        %v529 = vmax.f32 %v528, -1.0
        %v530 = vmul.f32 %v366, %v366
        %v531 = vmin.f32 16.0, %v530
        %v532 = vmul.f32 %v531, 2.1237322e-06
        %v533 = vadd.f32 %v532, 0.00028619796
        %v534 = vmul.f32 %v531, %v533
        %v535 = vadd.f32 %v534, 0.0036580483
        %v536 = vmul.f32 %v531, %v535
        %v537 = vadd.f32 %v536, 0.05243302
        %v538 = vmul.f32 %v531, %v537
        %v539 = vadd.f32 %v538, 0.18741608
        %v540 = vmul.f32 %v531, %v539
        %v541 = vadd.f32 %v540, 1.1283791
        %v542 = vmul.f32 %v366, %v541
        %v543 = vmul.f32 %v531, 3.8918573e-05
        %v544 = vadd.f32 %v543, 0.001143296
        %v545 = vmul.f32 %v531, %v544
        %v546 = vadd.f32 %v545, 0.014752088
        %v547 = vmul.f32 %v531, %v546
        %v548 = vadd.f32 %v547, 0.112945676
        %v549 = vmul.f32 %v531, %v548
        %v550 = vadd.f32 %v549, 0.4994258
        %v551 = vmul.f32 %v531, %v550
        %v552 = vadd.f32 %v551, 1.0
        %v553 = vrcp.pop %v552
        %v554 = vmul.f32 %v552, %v553
        %v555 = vsub.f32 1.0, %v554
        %v556 = vmul.f32 %v553, %v555
        %v557 = vadd.f32 %v553, %v556
        %vm558 = vweird.f32 %v552
        %vm559 = vweird.f32 %v553
        %vm560 = vmor %vm558, %vm559
        %v561 = vsel %vm560, %v553, %v557
        %v562 = vand.u32 2147483647, %v552
        %vm563 = vcmp.eq.f32.partialorder %v562, 8.507059e+37
        %v564 = vand.u32 %v552, 2147483648
        %v565 = vor.u32 1.1754944e-38, %v564
        %v566 = vsel %vm563, %v565, %v561
        %v567 = vmul.f32 %v542, %v566
        %v568 = vmin.f32 %v567, 1.0
        %v569 = vmax.f32 %v568, -1.0
        %v570 = vmul.f32 %v367, %v367
        %v571 = vmin.f32 16.0, %v570
        %v572 = vmul.f32 %v571, 2.1237322e-06
        %v573 = vadd.f32 %v572, 0.00028619796
        %v574 = vmul.f32 %v571, %v573
        %v575 = vadd.f32 %v574, 0.0036580483
        %v576 = vmul.f32 %v571, %v575
        %v577 = vadd.f32 %v576, 0.05243302
        %v578 = vmul.f32 %v571, %v577
        %v579 = vadd.f32 %v578, 0.18741608
        %v580 = vmul.f32 %v571, %v579
        %v581 = vadd.f32 %v580, 1.1283791
        %v582 = vmul.f32 %v367, %v581
        %v583 = vmul.f32 %v571, 3.8918573e-05
        %v584 = vadd.f32 %v583, 0.001143296
        %v585 = vmul.f32 %v571, %v584
        %v586 = vadd.f32 %v585, 0.014752088
        %v587 = vmul.f32 %v571, %v586
        %v588 = vadd.f32 %v587, 0.112945676
        %v589 = vmul.f32 %v571, %v588
        %v590 = vadd.f32 %v589, 0.4994258
        %v591 = vmul.f32 %v571, %v590
        %v592 = vadd.f32 %v591, 1.0
        %v593 = vrcp.pop %v592
        %v594 = vmul.f32 %v592, %v593
        %v595 = vsub.f32 1.0, %v594
        %v596 = vmul.f32 %v593, %v595
        %v597 = vadd.f32 %v593, %v596
        %vm598 = vweird.f32 %v592
        %vm599 = vweird.f32 %v593
        %vm600 = vmor %vm598, %vm599
        %v601 = vsel %vm600, %v593, %v597
        %v602 = vand.u32 2147483647, %v592
        %vm603 = vcmp.eq.f32.partialorder %v602, 8.507059e+37
        %v604 = vand.u32 %v592, 2147483648
        %v605 = vor.u32 1.1754944e-38, %v604
        %v606 = vsel %vm603, %v605, %v601
        %v607 = vmul.f32 %v582, %v606
        %v608 = vmin.f32 %v607, 1.0
        %v609 = vmax.f32 %v608, -1.0
        %v610 = vmul.f32 %v368, %v368
        %v611 = vmin.f32 16.0, %v610
        %v612 = vmul.f32 %v611, 2.1237322e-06
        %v613 = vadd.f32 %v612, 0.00028619796
        %v614 = vmul.f32 %v611, %v613
        %v615 = vadd.f32 %v614, 0.0036580483
        %v616 = vmul.f32 %v611, %v615
        %v617 = vadd.f32 %v616, 0.05243302
        %v618 = vmul.f32 %v611, %v617
        %v619 = vadd.f32 %v618, 0.18741608
        %v620 = vmul.f32 %v611, %v619
        %v621 = vadd.f32 %v620, 1.1283791
        %v622 = vmul.f32 %v368, %v621
        %v623 = vmul.f32 %v611, 3.8918573e-05
        %v624 = vadd.f32 %v623, 0.001143296
        %v625 = vmul.f32 %v611, %v624
        %v626 = vadd.f32 %v625, 0.014752088
        %v627 = vmul.f32 %v611, %v626
        %v628 = vadd.f32 %v627, 0.112945676
        %v629 = vmul.f32 %v611, %v628
        %v630 = vadd.f32 %v629, 0.4994258
        %v631 = vmul.f32 %v611, %v630
        %v632 = vadd.f32 %v631, 1.0
        %v633 = vrcp.pop %v632
        %v634 = vmul.f32 %v632, %v633
        %v635 = vsub.f32 1.0, %v634
        %v636 = vmul.f32 %v633, %v635
        %v637 = vadd.f32 %v633, %v636
        %vm638 = vweird.f32 %v632
        %vm639 = vweird.f32 %v633
        %vm640 = vmor %vm638, %vm639
        %v641 = vsel %vm640, %v633, %v637
        %v642 = vand.u32 2147483647, %v632
        %vm643 = vcmp.eq.f32.partialorder %v642, 8.507059e+37
        %v644 = vand.u32 %v632, 2147483648
        %v645 = vor.u32 1.1754944e-38, %v644
        %v646 = vsel %vm643, %v645, %v641
        %v647 = vmul.f32 %v622, %v646
        %v648 = vmin.f32 %v647, 1.0
        %v649 = vmax.f32 %v648, -1.0
        %v650 = vmul.f32 %v369, %v369
        %v651 = vmin.f32 16.0, %v650
        %v652 = vmul.f32 %v651, 2.1237322e-06
        %v653 = vadd.f32 %v652, 0.00028619796
        %v654 = vmul.f32 %v651, %v653
        %v655 = vadd.f32 %v654, 0.0036580483
        %v656 = vmul.f32 %v651, %v655
        %v657 = vadd.f32 %v656, 0.05243302
        %v658 = vmul.f32 %v651, %v657
        %v659 = vadd.f32 %v658, 0.18741608
        %v660 = vmul.f32 %v651, %v659
        %v661 = vadd.f32 %v660, 1.1283791
        %v662 = vmul.f32 %v369, %v661
        %v663 = vmul.f32 %v651, 3.8918573e-05
        %v664 = vadd.f32 %v663, 0.001143296
        %v665 = vmul.f32 %v651, %v664
        %v666 = vadd.f32 %v665, 0.014752088
        %v667 = vmul.f32 %v651, %v666
        %v668 = vadd.f32 %v667, 0.112945676
        %v669 = vmul.f32 %v651, %v668
        %v670 = vadd.f32 %v669, 0.4994258
        %v671 = vmul.f32 %v651, %v670
        %v672 = vadd.f32 %v671, 1.0
        %v673 = vrcp.pop %v672
        %v674 = vmul.f32 %v672, %v673
        %v675 = vsub.f32 1.0, %v674
        %v676 = vmul.f32 %v673, %v675
        %v677 = vadd.f32 %v673, %v676
        %vm678 = vweird.f32 %v672
        %vm679 = vweird.f32 %v673
        %vm680 = vmor %vm678, %vm679
        %v681 = vsel %vm680, %v673, %v677
        %v682 = vand.u32 2147483647, %v672
        %vm683 = vcmp.eq.f32.partialorder %v682, 8.507059e+37
        %v684 = vand.u32 %v672, 2147483648
        %v685 = vor.u32 1.1754944e-38, %v684
        %v686 = vsel %vm683, %v685, %v681
        %v687 = vmul.f32 %v662, %v686
        %v688 = vmin.f32 %v687, 1.0
        %v689 = vmax.f32 %v688, -1.0
        %v690 = vadd.f32 %v409, 1.0
        %v691 = vadd.f32 %v449, 1.0
        %v692 = vadd.f32 %v489, 1.0
        %v693 = vadd.f32 %v529, 1.0
        %v694 = vadd.f32 %v569, 1.0
        %v695 = vadd.f32 %v609, 1.0
        %v696 = vadd.f32 %v649, 1.0
        %v697 = vadd.f32 %v689, 1.0
        %v698 = vmul.f32 %v354, %v690
        %v699 = vmul.f32 %v355, %v691
        %v700 = vmul.f32 %v356, %v692
        %v701 = vmul.f32 %v357, %v693
        %v702 = vmul.f32 %v358, %v694
        %v703 = vmul.f32 %v359, %v695
        %v704 = vmul.f32 %v360, %v696
        %v705 = vmul.f32 %v361, %v697
        %v706 = vld [vmem:[%s3] sm:$0xff]
        %v707 = vld [vmem:[%s3 + $0x8] sm:$0xff]
        %v708 = vld [vmem:[%s4] sm:$0xff]
        %v709 = vld [vmem:[%s4 + $0x8] sm:$0xff]
        %711 = vset.pattern.permute.xlu0 0
        %712 = vperm.xlu0 %711, %v708
        %v713 = vpop.permute.xlu0 %712
        %716 = vset.pattern.permute.xlu0 0
        %717 = vperm.xlu0 %716, %v709
        %v718 = vpop.permute.xlu0 %717
        %v721 = vsel %vm283, %v706, 0
        %v724 = vsel %vm283, %v707, 0
        %726 = vmatpush.msra.mxu0 0.0
        %727 = vmatpush.msra.mxu0 0.0
        %728 = vmatpush.msra.mxu0 0.0
        %729 = vmatpush.msra.mxu0 0.0
        %730 = vmatpush.msra.mxu0 0.0
        %731 = vmatpush.msra.mxu0 0.0
        %732 = vmatpush.msra.mxu0 0.0
        %733 = vmatpush.msra.mxu0 0.0
        %734 = vmatpush.msra.mxu0 0.0
        %735 = vmatpush.msra.mxu0 0.0
        %736 = vmatpush.msra.mxu0 0.0
        %737 = vmatpush.msra.mxu0 0.0
        %738 = vmatpush.msra.mxu0 %v704
        %739 = vmatpush.msra.mxu0 %v702
        %740 = vmatpush.msra.mxu0 %v700
        %741 = vmatpush.msra.mxu0 %v698
        %742 = vmatmul.f32.gmra.mxu0 %v721
        %v743 = vpop.f32.mrf.mxu0
        %v744 = vadd.f32 %v713, %v743
        %745 = vmatmul.f32.gmra.mxu0 %v724
        %v746 = vpop.f32.mrf.mxu0
        %v747 = vadd.f32 %v718, %v746
        %748 = vdwg.mxu0
        %749 = vmatpush.msra.mxu0 0.0
        %750 = vmatpush.msra.mxu0 0.0
        %751 = vmatpush.msra.mxu0 0.0
        %752 = vmatpush.msra.mxu0 0.0
        %753 = vmatpush.msra.mxu0 0.0
        %754 = vmatpush.msra.mxu0 0.0
        %755 = vmatpush.msra.mxu0 0.0
        %756 = vmatpush.msra.mxu0 0.0
        %757 = vmatpush.msra.mxu0 0.0
        %758 = vmatpush.msra.mxu0 0.0
        %759 = vmatpush.msra.mxu0 0.0
        %760 = vmatpush.msra.mxu0 0.0
        %761 = vmatpush.msra.mxu0 %v705
        %762 = vmatpush.msra.mxu0 %v703
        %763 = vmatpush.msra.mxu0 %v701
        %764 = vmatpush.msra.mxu0 %v699
        %765 = vmatmul.f32.gmra.mxu0 %v721
        %v766 = vpop.f32.mrf.mxu0
        %v767 = vadd.f32 %v713, %v766
        %768 = vmatmul.f32.gmra.mxu0 %v724
        %v769 = vpop.f32.mrf.mxu0
        %v770 = vadd.f32 %v718, %v769
        %771 = vdwg.mxu0
        %772 = vst [vmem:[%s244] sm:$0xff] %v744
        %773 = vst [vmem:[%s244 + $0x8] sm:$0xff] %v767
        %774 = vst [vmem:[%s244 + $0x10] sm:$0xff] %v747
        %775 = vst [vmem:[%s244 + $0x18] sm:$0xff] %v770
        %s776 = sand.u32 %s140, 1
        %s777 = scalar_lea.sflag [#allocation4], %s776
        %s778 = sand.u32 %s140, 1
        %s779 = smul.addr %s778, 32
        %s780 = scalar_lea.vmem [#allocation5], %s779
        // Predicated region
        $region45: #{tpu_custom_call.1} parent=39 // pred_check
          %p781 = pneg %p150
        $region46: #{tpu_custom_call.1} parent=39 // pred_check_branch
          %783 = sbr.rel (%p781) target = $region48
        $region47: #{tpu_custom_call.1} parent=39 // pred_region
          %s784 = smul.u32 2, %s22
          %786 = vsyncadd %s777, 0
          %s787 = smul.addr %s784, 8
          %s788 = scalar_lea.hbm %s5, %s787
          %s789 = sshll.u32 %s780, 4
          %s790 = int_to_ptr.vmem [resolvable:$true] %s789
          %s791 = sshll.u32 %s788, 4
          %s792 = int_to_ptr.hbm [resolvable:$true] %s791
          %797 = dma.vmem_to_hbm [thread:$0]  %s790, 512, %s792, %s777, 256, 512, 16
        $region48: #{tpu_custom_call.1} parent=39 // pred_fallthru
          _
      $region40: #{tpu_custom_call.1} parent=5 // pred_fallthru
        _
      %p798 = scmp.le.s32.totalorder 2, %s17
      // Predicated region
      $region49: #{tpu_custom_call.1} parent=5 // pred_check
        %p799 = pneg %p798
      $region50: #{tpu_custom_call.1} parent=5 // pred_check_branch
        %801 = sbr.rel (%p799) target = $region52
      $region51: #{tpu_custom_call.1} parent=5 // pred_region
        %s802 = ssub.s32 %s17, 2
        // Predicated region
        $region53: #{tpu_custom_call.1} parent=51 // pred_check
          %p803 = pneg %p156
        $region54: #{tpu_custom_call.1} parent=51 // pred_check_branch
          %805 = sbr.rel (%p803) target = $region56
        $region55: #{tpu_custom_call.1} parent=51 // pred_region
          %s806 = sand.u32 %s141, 1
          %s807 = scalar_lea.sflag [#allocation4], %s806
          %s808 = sand.u32 %s141, 1
          %s809 = smul.addr %s808, 32
          %s810 = scalar_lea.vmem [#allocation5], %s809
          %812 = dma.done %s807, 512
        $region56: #{tpu_custom_call.1} parent=51 // pred_fallthru
          _
      $region52: #{tpu_custom_call.1} parent=5 // pred_fallthru
        _
    $region6: #{tpu_custom_call.1} parent=1 // loop_footer
      %s21 = sadd.s32 1, %s17
    $region7: #{tpu_custom_call.1} parent=1 // loop_footer_branch
      %16 = sbr.rel target = $region3
    $region8: #{tpu_custom_call.1} parent=1 // loop_exit
      _
    %813 = vsyncpa [#allocation3], 1
    %s814 = scalar_lea.sflag [#allocation3], 1
    %815 = vsyncpa %s814, 1
    %816 = vsyncpa [#allocation4], 1
    %s817 = scalar_lea.sflag [#allocation4], 1
    %818 = vsyncpa %s817, 1

</llo_original>
